<compile_context>
chip_gen: v6e
topology: v6e:2x2x1
jax: 0.10.0
libtpu: 0.0.40
codegen_flags: <defaults>
</compile_context>

<pallas_src>
import functools

import jax
import jax.numpy as jnp
import numpy as np
from jax.experimental import pallas as pl
from jax.experimental.pallas import tpu as pltpu

ENC_DIM = 768          # encoder hidden size
CONV_DIM = 16          # conv_model output size
HID = 768              # fc_categ output size
NCLS = 5               # head_categ output size
NCLS_PAD = 128         # lane-dense logits slab width
LMBDA = 0.5


def _mtm_kernel(xe_ref, xc_ref, w1e_ref, w1c_ref, b1_ref, w2_ref, b2_ref,
                lab_ref, logits_ref, loss_ref,
                sk_ref, ck_ref, su_ref, cu_ref):
    i = pl.program_id(0)

    @pl.when(i == 0)
    def _init():
        sk_ref[...] = jnp.zeros_like(sk_ref)
        ck_ref[...] = jnp.zeros_like(ck_ref)
        su_ref[...] = jnp.zeros_like(su_ref)
        cu_ref[...] = jnp.zeros_like(cu_ref)

    # fc_categ, split at the hstack boundary: a K=768 MXU-aligned matmul plus a
    # tiny K=16 side matmul. bf16 operands, f32 accumulation.
    h = (jnp.dot(xe_ref[...], w1e_ref[...], preferred_element_type=jnp.float32)
         + jnp.dot(xc_ref[...], w1c_ref[...], preferred_element_type=jnp.float32)
         + b1_ref[...])
    h = jnp.tanh(h)                                                # (TB, 768) f32

    # head_categ on zero-padded (768,128) weight -> lane-dense output slab.
    logits = jnp.dot(h.astype(jnp.bfloat16), w2_ref[...],
                     preferred_element_type=jnp.float32) + b2_ref[...]   # (TB,128)
    logits_ref[...] = logits

    # ---- masked cross-entropy statistics, accumulated across batch tiles ----
    labels = lab_ref[...]                                          # (TB, 1) int32
    cls = jax.lax.broadcasted_iota(jnp.int32, logits.shape, 1)     # (TB, 128)
    real = cls < NCLS                                              # mask out pad cols

    masked = jnp.where(real, logits, -jnp.inf)
    m = jnp.max(masked, axis=-1, keepdims=True)                    # (TB, 1)
    lse = m + jnp.log(jnp.sum(jnp.exp(masked - m), axis=-1, keepdims=True))

    # CE with true labels: lse - logits[label] (gather via one-hot select).
    x_at_label = jnp.sum(jnp.where(cls == labels, logits, 0.0),
                         axis=-1, keepdims=True)
    ce_known = lse - x_at_label
    # CE with pseudo-label argmax over first 4 classes:
    #   lse - logits[argmax_{j<4}] == lse - max_{j<4} logits[j]
    max_first4 = jnp.max(jnp.where(cls < 4, logits, -jnp.inf),
                         axis=-1, keepdims=True)
    ce_unknown = lse - max_first4

    valid = (labels >= 0).astype(jnp.float32)       # padded rows carry label -1
    known = valid * (labels != NCLS).astype(jnp.float32)
    unknown = valid * (labels == NCLS).astype(jnp.float32)

    sk_ref[...] += jnp.sum(known * ce_known, axis=0, keepdims=True)
    ck_ref[...] += jnp.sum(known, axis=0, keepdims=True)
    su_ref[...] += jnp.sum(unknown * ce_unknown, axis=0, keepdims=True)
    cu_ref[...] += jnp.sum(unknown, axis=0, keepdims=True)

    @pl.when(i == pl.num_programs(0) - 1)
    def _finalize():
        # torch's CrossEntropyLoss would NaN on an empty group; the guard keeps
        # the loss finite if a whole batch is all-known or all-unknown.
        cnt_k = jnp.maximum(ck_ref[...], 1.0)
        cnt_u = jnp.maximum(cu_ref[...], 1.0)
        loss_ref[...] = sk_ref[...] / cnt_k + LMBDA * (su_ref[...] / cnt_u)


def prepare_params(w1, b1, w2, b2):
    """One-time param prep: split fc_categ at the hstack boundary, cast the
    matmul weights to bf16, and zero-pad head_categ to a lane-dense 128 cols."""
    w1 = jnp.asarray(w1, jnp.float32)                      # (784, 768), x @ W layout
    w1_enc = w1[:ENC_DIM].astype(jnp.bfloat16)             # (768, 768)
    w1_conv = w1[ENC_DIM:].astype(jnp.bfloat16)            # (16, 768)
    b1 = jnp.asarray(b1, jnp.float32).reshape(1, HID)
    w2 = jnp.asarray(w2, jnp.float32)                      # (768, 5)
    w2_pad = (jnp.zeros((HID, NCLS_PAD), jnp.float32)
              .at[:, :NCLS].set(w2).astype(jnp.bfloat16))  # (768, 128)
    b2_pad = (jnp.zeros((1, NCLS_PAD), jnp.float32)
              .at[0, :NCLS].set(jnp.asarray(b2, jnp.float32).reshape(NCLS)))
    return w1_enc, w1_conv, b1, w2_pad, b2_pad


@functools.partial(jax.jit, static_argnames=("tile_b",))
def multitask_forward(x_enc, x_conv, labels, prepared, tile_b=128):
    """x_enc: (B,768) f32, x_conv: (B,16) f32, labels: (B,) int32 in {0..5}."""
    w1_enc, w1_conv, b1, w2_pad, b2_pad = prepared
    B = x_enc.shape[0]

    tb = min(tile_b, max(8, -(-B // 8) * 8))        # batch tile, multiple of 8
    b_pad = -(-B // tb) * tb
    grid = b_pad // tb
    pad = b_pad - B

    xe = jnp.pad(x_enc, ((0, pad), (0, 0))).astype(jnp.bfloat16)
    xc = jnp.pad(x_conv, ((0, pad), (0, 0))).astype(jnp.bfloat16)
    lab = jnp.pad(labels.astype(jnp.int32), ((0, pad),),
                  constant_values=-1).reshape(b_pad, 1)

    logits_pad, loss = pl.pallas_call(
        _mtm_kernel,
        out_shape=(jax.ShapeDtypeStruct((b_pad, NCLS_PAD), jnp.float32),
                   jax.ShapeDtypeStruct((1, 1), jnp.float32)),
        grid_spec=pltpu.PrefetchScalarGridSpec(
            num_scalar_prefetch=0,
            grid=(grid,),
            in_specs=[
                pl.BlockSpec((tb, ENC_DIM), lambda i: (i, 0)),       # x_enc tile
                pl.BlockSpec((tb, CONV_DIM), lambda i: (i, 0)),      # x_conv tile
                pl.BlockSpec((ENC_DIM, HID), lambda i: (0, 0)),      # w1_enc (resident)
                pl.BlockSpec((CONV_DIM, HID), lambda i: (0, 0)),     # w1_conv (resident)
                pl.BlockSpec((1, HID), lambda i: (0, 0)),            # b1 (resident)
                pl.BlockSpec((HID, NCLS_PAD), lambda i: (0, 0)),     # w2 padded (resident)
                pl.BlockSpec((1, NCLS_PAD), lambda i: (0, 0)),       # b2 padded (resident)
                pl.BlockSpec((tb, 1), lambda i: (i, 0)),             # labels tile
            ],
            out_specs=[
                pl.BlockSpec((tb, NCLS_PAD), lambda i: (i, 0)),      # lane-dense logits
                pl.BlockSpec((1, 1), lambda i: (0, 0)),              # scalar loss
            ],
            scratch_shapes=[pltpu.VMEM((1, 1), jnp.float32)] * 4,    # sum_k,cnt_k,sum_u,cnt_u
        ),
        compiler_params=pltpu.CompilerParams(
            # The batch axis carries the loss accumulator -> must be sequential.
            dimension_semantics=("arbitrary",),
        ),
    )(xe, xc, w1_enc, w1_conv, b1, w2_pad, b2_pad, lab)

    return logits_pad[:B, :NCLS], loss[0, 0]


def _reference(x_enc, x_conv, labels, w1, b1, w2, b2):
    """Pure-JAX f32 reference matching the torch forward."""
    hi = jax.lax.Precision.HIGHEST
    x = jnp.concatenate([x_enc, x_conv], axis=1)
    h = jnp.tanh(jnp.dot(x, w1, precision=hi) + b1)
    logits = jnp.dot(h, w2, precision=hi) + b2
    lse = jax.scipy.special.logsumexp(logits, axis=-1)
    B = x.shape[0]
    gather_lab = jnp.where(labels == NCLS, 0, labels)
    ce_k = lse - logits[jnp.arange(B), gather_lab]
    ce_u = lse - jnp.max(logits[:, :4], axis=-1)
    known = labels != NCLS
    loss = (jnp.sum(jnp.where(known, ce_k, 0.0)) / jnp.sum(known)
            + LMBDA * jnp.sum(jnp.where(~known, ce_u, 0.0)) / jnp.sum(~known))
    return logits, loss


if __name__ == "__main__":
    key = jax.random.PRNGKey(0)
    k1, k2, k3, k4, k5, k6 = jax.random.split(key, 6)

    # Deterministic parameter init (BART-style N(0, 0.02), zero bias), stored
    # as (in, out) for x @ W in-kernel.
    w1 = 0.02 * jax.random.normal(k3, (ENC_DIM + CONV_DIM, HID), jnp.float32)
    b1 = jnp.zeros((HID,), jnp.float32)
    w2 = 0.02 * jax.random.normal(k4, (HID, NCLS), jnp.float32)
    b2 = jnp.zeros((NCLS,), jnp.float32)
    prepared = prepare_params(w1, b1, w2, b2)

    # --- case 1: small batch, single grid step ---
    B = 8
    x_enc = jax.random.normal(k1, (B, ENC_DIM), jnp.float32)
    x_conv = jax.random.normal(k2, (B, CONV_DIM), jnp.float32)
    labels = jnp.array([0, 1, 5, 2, 5, 3, 4, 5], dtype=jnp.int32)

    logits, loss = multitask_forward(x_enc, x_conv, labels, prepared)
    jax.block_until_ready((logits, loss))

    ref_logits, ref_loss = _reference(x_enc, x_conv, labels, w1, b1, w2, b2)
    # bf16 matmul operands in the kernel -> looser tolerance vs f32 reference.
    assert np.allclose(np.asarray(logits), np.asarray(ref_logits),
                       rtol=3e-2, atol=3e-2)
    assert np.allclose(float(loss), float(ref_loss), rtol=3e-2, atol=3e-2)

    # --- case 2: multi-tile batch (exercises the init/accumulate/finalize
    #             loss path and batch padding), tile_b=8 -> grid of 3 ---
    B2 = 24
    x_enc2 = jax.random.normal(k5, (B2, ENC_DIM), jnp.float32)
    x_conv2 = jax.random.normal(k6, (B2, CONV_DIM), jnp.float32)
    labels2 = jnp.array([5, 0] + [(i * 3) % 6 for i in range(B2 - 2)],
                        dtype=jnp.int32)          # mix of known and unknown

    logits2, loss2 = multitask_forward(x_enc2, x_conv2, labels2, prepared,
                                       tile_b=8)
    jax.block_until_ready((logits2, loss2))

    ref_logits2, ref_loss2 = _reference(x_enc2, x_conv2, labels2, w1, b1, w2, b2)
    assert np.allclose(np.asarray(logits2), np.asarray(ref_logits2),
                       rtol=3e-2, atol=3e-2)
    assert np.allclose(float(loss2), float(ref_loss2), rtol=3e-2, atol=3e-2)

    print("KERNEL_OK")
</pallas_src>

<mosaic_0001>
module attributes {stable_mosaic.version = 11 : i64} {
  func.func @_mtm_kernel(%arg0: i32, %arg1: memref<8x768xbf16, #tpu.memory_space<vmem>>, %arg2: memref<8x16xbf16, #tpu.memory_space<vmem>>, %arg3: memref<768x768xbf16, #tpu.memory_space<vmem>>, %arg4: memref<16x768xbf16, #tpu.memory_space<vmem>>, %arg5: memref<1x768xf32, #tpu.memory_space<vmem>>, %arg6: memref<768x128xbf16, #tpu.memory_space<vmem>>, %arg7: memref<1x128xf32, #tpu.memory_space<vmem>>, %arg8: memref<8x1xi32, #tpu.memory_space<vmem>>, %arg9: memref<8x128xf32, #tpu.memory_space<vmem>>, %arg10: memref<1x1xf32, #tpu.memory_space<vmem>>, %arg11: memref<1x1xf32, #tpu.memory_space<vmem>>, %arg12: memref<1x1xf32, #tpu.memory_space<vmem>>, %arg13: memref<1x1xf32, #tpu.memory_space<vmem>>, %arg14: memref<1x1xf32, #tpu.memory_space<vmem>>) attributes {dimension_semantics = [#tpu.dimension_semantics<arbitrary>], iteration_bounds = array<i64: 1>, scalar_prefetch = 0 : i64, scratch_operands = 4 : i64, tpu.core_type = #tpu.core_type<tc>, window_params = [{transform_indices = @transform_0, window_bounds = array<i64: 8, 768>}, {transform_indices = @transform_1, window_bounds = array<i64: 8, 16>}, {pipeline_mode = #tpu.pipeline_mode<synchronous>, transform_indices = @transform_2, window_bounds = array<i64: 768, 768>}, {pipeline_mode = #tpu.pipeline_mode<synchronous>, transform_indices = @transform_3, window_bounds = array<i64: 16, 768>}, {pipeline_mode = #tpu.pipeline_mode<synchronous>, transform_indices = @transform_4, window_bounds = array<i64: 1, 768>}, {pipeline_mode = #tpu.pipeline_mode<synchronous>, transform_indices = @transform_5, window_bounds = array<i64: 768, 128>}, {pipeline_mode = #tpu.pipeline_mode<synchronous>, transform_indices = @transform_6, window_bounds = array<i64: 1, 128>}, {transform_indices = @transform_7, window_bounds = array<i64: 8, 1>}, {transform_indices = @transform_8, window_bounds = array<i64: 8, 128>}, {pipeline_mode = #tpu.pipeline_mode<synchronous>, transform_indices = @transform_9, window_bounds = array<i64: 1, 1>}]} {
    %c0_i32 = arith.constant 0 : i32
    %0 = arith.cmpi eq, %arg0, %c0_i32 : i32
    %1 = arith.extui %0 : i1 to i32
    %c0_i32_0 = arith.constant 0 : i32
    %2 = arith.cmpi ne, %1, %c0_i32_0 : i32
    scf.if %2 {
      %cst_52 = arith.constant 0.000000e+00 : f32
      %89 = vector.broadcast %cst_52 : f32 to vector<1x1xf32>
      %c0_53 = arith.constant 0 : index
      %c0_54 = arith.constant 0 : index
      %90 = vector.load %arg11[%c0_53, %c0_54] : memref<1x1xf32, #tpu.memory_space<vmem>>, vector<1x1xf32>
      tpu.vector_store %arg11[%c0_53, %c0_54], %89 {strides = array<i32>} : memref<1x1xf32, #tpu.memory_space<vmem>>, vector<1x1xf32>,
      %cst_55 = arith.constant 0.000000e+00 : f32
      %91 = vector.broadcast %cst_55 : f32 to vector<1x1xf32>
      %c0_56 = arith.constant 0 : index
      %c0_57 = arith.constant 0 : index
      %92 = vector.load %arg12[%c0_56, %c0_57] : memref<1x1xf32, #tpu.memory_space<vmem>>, vector<1x1xf32>
      tpu.vector_store %arg12[%c0_56, %c0_57], %91 {strides = array<i32>} : memref<1x1xf32, #tpu.memory_space<vmem>>, vector<1x1xf32>,
      %cst_58 = arith.constant 0.000000e+00 : f32
      %93 = vector.broadcast %cst_58 : f32 to vector<1x1xf32>
      %c0_59 = arith.constant 0 : index
      %c0_60 = arith.constant 0 : index
      %94 = vector.load %arg13[%c0_59, %c0_60] : memref<1x1xf32, #tpu.memory_space<vmem>>, vector<1x1xf32>
      tpu.vector_store %arg13[%c0_59, %c0_60], %93 {strides = array<i32>} : memref<1x1xf32, #tpu.memory_space<vmem>>, vector<1x1xf32>,
      %cst_61 = arith.constant 0.000000e+00 : f32
      %95 = vector.broadcast %cst_61 : f32 to vector<1x1xf32>
      %c0_62 = arith.constant 0 : index
      %c0_63 = arith.constant 0 : index
      %96 = vector.load %arg14[%c0_62, %c0_63] : memref<1x1xf32, #tpu.memory_space<vmem>>, vector<1x1xf32>
      tpu.vector_store %arg14[%c0_62, %c0_63], %95 {strides = array<i32>} : memref<1x1xf32, #tpu.memory_space<vmem>>, vector<1x1xf32>,
    } else {
    }
    %c0 = arith.constant 0 : index
    %c0_1 = arith.constant 0 : index
    %3 = vector.load %arg1[%c0, %c0_1] : memref<8x768xbf16, #tpu.memory_space<vmem>>, vector<8x768xbf16>
    %c0_2 = arith.constant 0 : index
    %c0_3 = arith.constant 0 : index
    %4 = vector.load %arg3[%c0_2, %c0_3] : memref<768x768xbf16, #tpu.memory_space<vmem>>, vector<768x768xbf16>
    %cst = arith.constant dense<0.000000e+00> : vector<8x768xf32>
    %5 = tpu.matmul %3, %4, %cst {dimension_numbers = #tpu.dot_dimension_numbers<[1], [0], [0], [1], [0, 0, 1, 1], [], []>} : vector<8x768xbf16>, vector<768x768xbf16>, vector<8x768xf32> -> vector<8x768xf32>
    %c0_4 = arith.constant 0 : index
    %c0_5 = arith.constant 0 : index
    %6 = vector.load %arg2[%c0_4, %c0_5] : memref<8x16xbf16, #tpu.memory_space<vmem>>, vector<8x16xbf16>
    %c0_6 = arith.constant 0 : index
    %c0_7 = arith.constant 0 : index
    %7 = vector.load %arg4[%c0_6, %c0_7] : memref<16x768xbf16, #tpu.memory_space<vmem>>, vector<16x768xbf16>
    %cst_8 = arith.constant dense<0.000000e+00> : vector<8x768xf32>
    %8 = tpu.matmul %6, %7, %cst_8 {dimension_numbers = #tpu.dot_dimension_numbers<[1], [0], [0], [1], [0, 0, 1, 1], [], []>} : vector<8x16xbf16>, vector<16x768xbf16>, vector<8x768xf32> -> vector<8x768xf32>
    %9 = arith.addf %5, %8 : vector<8x768xf32>
    %c0_9 = arith.constant 0 : index
    %c0_10 = arith.constant 0 : index
    %10 = vector.load %arg5[%c0_9, %c0_10] : memref<1x768xf32, #tpu.memory_space<vmem>>, vector<1x768xf32>
    %11 = vector.broadcast %10 : vector<1x768xf32> to vector<8x768xf32>
    %12 = arith.addf %9, %11 : vector<8x768xf32>
    %13 = math.tanh %12 : vector<8x768xf32>
    %14 = arith.truncf %13 : vector<8x768xf32> to vector<8x768xbf16>
    %c0_11 = arith.constant 0 : index
    %c0_12 = arith.constant 0 : index
    %15 = vector.load %arg6[%c0_11, %c0_12] : memref<768x128xbf16, #tpu.memory_space<vmem>>, vector<768x128xbf16>
    %cst_13 = arith.constant dense<0.000000e+00> : vector<8x128xf32>
    %16 = tpu.matmul %14, %15, %cst_13 {dimension_numbers = #tpu.dot_dimension_numbers<[1], [0], [0], [1], [0, 0, 1, 1], [], []>} : vector<8x768xbf16>, vector<768x128xbf16>, vector<8x128xf32> -> vector<8x128xf32>
    %c0_14 = arith.constant 0 : index
    %c0_15 = arith.constant 0 : index
    %17 = vector.load %arg7[%c0_14, %c0_15] : memref<1x128xf32, #tpu.memory_space<vmem>>, vector<1x128xf32>
    %18 = vector.broadcast %17 : vector<1x128xf32> to vector<8x128xf32>
    %19 = arith.addf %16, %18 : vector<8x128xf32>
    %c0_16 = arith.constant 0 : index
    %c0_17 = arith.constant 0 : index
    %20 = vector.load %arg9[%c0_16, %c0_17] : memref<8x128xf32, #tpu.memory_space<vmem>>, vector<8x128xf32>
    tpu.vector_store %arg9[%c0_16, %c0_17], %19 {strides = array<i32>} : memref<8x128xf32, #tpu.memory_space<vmem>>, vector<8x128xf32>,
    %c0_18 = arith.constant 0 : index
    %c0_19 = arith.constant 0 : index
    %21 = vector.load %arg8[%c0_18, %c0_19] : memref<8x1xi32, #tpu.memory_space<vmem>>, vector<8x1xi32>
    %22 = tpu.iota {dimensions = array<i32: 1>} : vector<8x128xi32>
    %c5_i32 = arith.constant 5 : i32
    %23 = vector.broadcast %c5_i32 : i32 to vector<8x128xi32>
    %24 = arith.cmpi slt, %22, %23 : vector<8x128xi32>
    %cst_20 = arith.constant 0xFF800000 : f32
    %25 = vector.broadcast %cst_20 : f32 to vector<8x128xf32>
    %26 = arith.select %24, %19, %25 : vector<8x128xi1>, vector<8x128xf32>
    %cst_21 = arith.constant dense<0xFF800000> : vector<8xf32>
    %27 = vector.multi_reduction <maximumf>, %26, %cst_21 [1] : vector<8x128xf32> to vector<8xf32>
    %28 = vector.shape_cast %27 : vector<8xf32> to vector<8x1xf32>
    %29 = vector.broadcast %28 : vector<8x1xf32> to vector<8x128xf32>
    %30 = arith.subf %26, %29 : vector<8x128xf32>
    %31 = math.exp %30 : vector<8x128xf32>
    %cst_22 = arith.constant dense<0.000000e+00> : vector<8xf32>
    %32 = vector.multi_reduction <add>, %31, %cst_22 [1] : vector<8x128xf32> to vector<8xf32>
    %33 = vector.shape_cast %32 : vector<8xf32> to vector<8x1xf32>
    %34 = math.log %33 : vector<8x1xf32>
    %35 = arith.addf %28, %34 : vector<8x1xf32>
    %36 = vector.broadcast %21 : vector<8x1xi32> to vector<8x128xi32>
    %37 = arith.cmpi eq, %22, %36 : vector<8x128xi32>
    %cst_23 = arith.constant 0.000000e+00 : f32
    %38 = vector.broadcast %cst_23 : f32 to vector<8x128xf32>
    %39 = arith.select %37, %19, %38 : vector<8x128xi1>, vector<8x128xf32>
    %cst_24 = arith.constant dense<0.000000e+00> : vector<8xf32>
    %40 = vector.multi_reduction <add>, %39, %cst_24 [1] : vector<8x128xf32> to vector<8xf32>
    %41 = vector.shape_cast %40 : vector<8xf32> to vector<8x1xf32>
    %42 = arith.subf %35, %41 : vector<8x1xf32>
    %c4_i32 = arith.constant 4 : i32
    %43 = vector.broadcast %c4_i32 : i32 to vector<8x128xi32>
    %44 = arith.cmpi slt, %22, %43 : vector<8x128xi32>
    %cst_25 = arith.constant 0xFF800000 : f32
    %45 = vector.broadcast %cst_25 : f32 to vector<8x128xf32>
    %46 = arith.select %44, %19, %45 : vector<8x128xi1>, vector<8x128xf32>
    %cst_26 = arith.constant dense<0xFF800000> : vector<8xf32>
    %47 = vector.multi_reduction <maximumf>, %46, %cst_26 [1] : vector<8x128xf32> to vector<8xf32>
    %48 = vector.shape_cast %47 : vector<8xf32> to vector<8x1xf32>
    %49 = arith.subf %35, %48 : vector<8x1xf32>
    %c0_i32_27 = arith.constant 0 : i32
    %50 = vector.broadcast %c0_i32_27 : i32 to vector<8x1xi32>
    %51 = arith.cmpi sge, %21, %50 : vector<8x1xi32>
    %52 = arith.extui %51 : vector<8x1xi1> to vector<8x1xi32>
    %53 = arith.sitofp %52 : vector<8x1xi32> to vector<8x1xf32>
    %c5_i32_28 = arith.constant 5 : i32
    %54 = vector.broadcast %c5_i32_28 : i32 to vector<8x1xi32>
    %55 = arith.cmpi ne, %21, %54 : vector<8x1xi32>
    %56 = arith.extui %55 : vector<8x1xi1> to vector<8x1xi32>
    %57 = arith.sitofp %56 : vector<8x1xi32> to vector<8x1xf32>
    %58 = arith.mulf %53, %57 : vector<8x1xf32>
    %c5_i32_29 = arith.constant 5 : i32
    %59 = vector.broadcast %c5_i32_29 : i32 to vector<8x1xi32>
    %60 = arith.cmpi eq, %21, %59 : vector<8x1xi32>
    %61 = arith.extui %60 : vector<8x1xi1> to vector<8x1xi32>
    %62 = arith.sitofp %61 : vector<8x1xi32> to vector<8x1xf32>
    %63 = arith.mulf %53, %62 : vector<8x1xf32>
    %c0_30 = arith.constant 0 : index
    %c0_31 = arith.constant 0 : index
    %64 = vector.load %arg11[%c0_30, %c0_31] : memref<1x1xf32, #tpu.memory_space<vmem>>, vector<1x1xf32>
    %65 = arith.mulf %58, %42 : vector<8x1xf32>
    %cst_32 = arith.constant dense<0.000000e+00> : vector<1xf32>
    %66 = vector.multi_reduction <add>, %65, %cst_32 [0] : vector<8x1xf32> to vector<1xf32>
    %67 = vector.shape_cast %66 : vector<1xf32> to vector<1x1xf32>
    %68 = arith.addf %64, %67 : vector<1x1xf32>
    %c0_33 = arith.constant 0 : index
    %c0_34 = arith.constant 0 : index
    %69 = vector.load %arg11[%c0_33, %c0_34] : memref<1x1xf32, #tpu.memory_space<vmem>>, vector<1x1xf32>
    tpu.vector_store %arg11[%c0_33, %c0_34], %68 {strides = array<i32>} : memref<1x1xf32, #tpu.memory_space<vmem>>, vector<1x1xf32>,
    %c0_35 = arith.constant 0 : index
    %c0_36 = arith.constant 0 : index
    %70 = vector.load %arg12[%c0_35, %c0_36] : memref<1x1xf32, #tpu.memory_space<vmem>>, vector<1x1xf32>
    %cst_37 = arith.constant dense<0.000000e+00> : vector<1xf32>
    %71 = vector.multi_reduction <add>, %58, %cst_37 [0] : vector<8x1xf32> to vector<1xf32>
    %72 = vector.shape_cast %71 : vector<1xf32> to vector<1x1xf32>
    %73 = arith.addf %70, %72 : vector<1x1xf32>
    %c0_38 = arith.constant 0 : index
    %c0_39 = arith.constant 0 : index
    %74 = vector.load %arg12[%c0_38, %c0_39] : memref<1x1xf32, #tpu.memory_space<vmem>>, vector<1x1xf32>
    tpu.vector_store %arg12[%c0_38, %c0_39], %73 {strides = array<i32>} : memref<1x1xf32, #tpu.memory_space<vmem>>, vector<1x1xf32>,
    %c0_40 = arith.constant 0 : index
    %c0_41 = arith.constant 0 : index
    %75 = vector.load %arg13[%c0_40, %c0_41] : memref<1x1xf32, #tpu.memory_space<vmem>>, vector<1x1xf32>
    %76 = arith.mulf %63, %49 : vector<8x1xf32>
    %cst_42 = arith.constant dense<0.000000e+00> : vector<1xf32>
    %77 = vector.multi_reduction <add>, %76, %cst_42 [0] : vector<8x1xf32> to vector<1xf32>
    %78 = vector.shape_cast %77 : vector<1xf32> to vector<1x1xf32>
    %79 = arith.addf %75, %78 : vector<1x1xf32>
    %c0_43 = arith.constant 0 : index
    %c0_44 = arith.constant 0 : index
    %80 = vector.load %arg13[%c0_43, %c0_44] : memref<1x1xf32, #tpu.memory_space<vmem>>, vector<1x1xf32>
    tpu.vector_store %arg13[%c0_43, %c0_44], %79 {strides = array<i32>} : memref<1x1xf32, #tpu.memory_space<vmem>>, vector<1x1xf32>,
    %c0_45 = arith.constant 0 : index
    %c0_46 = arith.constant 0 : index
    %81 = vector.load %arg14[%c0_45, %c0_46] : memref<1x1xf32, #tpu.memory_space<vmem>>, vector<1x1xf32>
    %cst_47 = arith.constant dense<0.000000e+00> : vector<1xf32>
    %82 = vector.multi_reduction <add>, %63, %cst_47 [0] : vector<8x1xf32> to vector<1xf32>
    %83 = vector.shape_cast %82 : vector<1xf32> to vector<1x1xf32>
    %84 = arith.addf %81, %83 : vector<1x1xf32>
    %c0_48 = arith.constant 0 : index
    %c0_49 = arith.constant 0 : index
    %85 = vector.load %arg14[%c0_48, %c0_49] : memref<1x1xf32, #tpu.memory_space<vmem>>, vector<1x1xf32>
    tpu.vector_store %arg14[%c0_48, %c0_49], %84 {strides = array<i32>} : memref<1x1xf32, #tpu.memory_space<vmem>>, vector<1x1xf32>,
    %c0_i32_50 = arith.constant 0 : i32
    %86 = arith.cmpi eq, %arg0, %c0_i32_50 : i32
    %87 = arith.extui %86 : i1 to i32
    %c0_i32_51 = arith.constant 0 : i32
    %88 = arith.cmpi ne, %87, %c0_i32_51 : i32
    scf.if %88 {
      %c0_52 = arith.constant 0 : index
      %c0_53 = arith.constant 0 : index
      %89 = vector.load %arg12[%c0_52, %c0_53] : memref<1x1xf32, #tpu.memory_space<vmem>>, vector<1x1xf32>
      %cst_54 = arith.constant 1.000000e+00 : f32
      %90 = vector.broadcast %cst_54 : f32 to vector<1x1xf32>
      %91 = arith.maximumf %89, %90 : vector<1x1xf32>
      %c0_55 = arith.constant 0 : index
      %c0_56 = arith.constant 0 : index
      %92 = vector.load %arg14[%c0_55, %c0_56] : memref<1x1xf32, #tpu.memory_space<vmem>>, vector<1x1xf32>
      %cst_57 = arith.constant 1.000000e+00 : f32
      %93 = vector.broadcast %cst_57 : f32 to vector<1x1xf32>
      %94 = arith.maximumf %92, %93 : vector<1x1xf32>
      %c0_58 = arith.constant 0 : index
      %c0_59 = arith.constant 0 : index
      %95 = vector.load %arg11[%c0_58, %c0_59] : memref<1x1xf32, #tpu.memory_space<vmem>>, vector<1x1xf32>
      %96 = arith.divf %95, %91 : vector<1x1xf32>
      %c0_60 = arith.constant 0 : index
      %c0_61 = arith.constant 0 : index
      %97 = vector.load %arg13[%c0_60, %c0_61] : memref<1x1xf32, #tpu.memory_space<vmem>>, vector<1x1xf32>
      %98 = arith.divf %97, %94 : vector<1x1xf32>
      %cst_62 = arith.constant 5.000000e-01 : f32
      %99 = vector.broadcast %cst_62 : f32 to vector<1x1xf32>
      %100 = arith.mulf %99, %98 : vector<1x1xf32>
      %101 = arith.addf %96, %100 : vector<1x1xf32>
      %c0_63 = arith.constant 0 : index
      %c0_64 = arith.constant 0 : index
      %102 = vector.load %arg10[%c0_63, %c0_64] : memref<1x1xf32, #tpu.memory_space<vmem>>, vector<1x1xf32>
      tpu.vector_store %arg10[%c0_63, %c0_64], %101 {strides = array<i32>} : memref<1x1xf32, #tpu.memory_space<vmem>>, vector<1x1xf32>,
    } else {
    }
    return
  }
  func.func @transform_0(%arg0: i32) -> (i32, i32) {
    %c0_i32 = arith.constant 0 : i32
    %c0_i32_0 = arith.constant 0 : i32
    return %arg0, %c0_i32 : i32, i32
  }
  func.func @transform_1(%arg0: i32) -> (i32, i32) {
    %c0_i32 = arith.constant 0 : i32
    %c0_i32_0 = arith.constant 0 : i32
    return %arg0, %c0_i32 : i32, i32
  }
  func.func @transform_2(%arg0: i32) -> (i32, i32) {
    %c0_i32 = arith.constant 0 : i32
    %c0_i32_0 = arith.constant 0 : i32
    %c0_i32_1 = arith.constant 0 : i32
    return %c0_i32, %c0_i32_0 : i32, i32
  }
  func.func @transform_3(%arg0: i32) -> (i32, i32) {
    %c0_i32 = arith.constant 0 : i32
    %c0_i32_0 = arith.constant 0 : i32
    %c0_i32_1 = arith.constant 0 : i32
    return %c0_i32, %c0_i32_0 : i32, i32
  }
  func.func @transform_4(%arg0: i32) -> (i32, i32) {
    %c0_i32 = arith.constant 0 : i32
    %c0_i32_0 = arith.constant 0 : i32
    %c0_i32_1 = arith.constant 0 : i32
    return %c0_i32, %c0_i32_0 : i32, i32
  }
  func.func @transform_5(%arg0: i32) -> (i32, i32) {
    %c0_i32 = arith.constant 0 : i32
    %c0_i32_0 = arith.constant 0 : i32
    %c0_i32_1 = arith.constant 0 : i32
    return %c0_i32, %c0_i32_0 : i32, i32
  }
  func.func @transform_6(%arg0: i32) -> (i32, i32) {
    %c0_i32 = arith.constant 0 : i32
    %c0_i32_0 = arith.constant 0 : i32
    %c0_i32_1 = arith.constant 0 : i32
    return %c0_i32, %c0_i32_0 : i32, i32
  }
  func.func @transform_7(%arg0: i32) -> (i32, i32) {
    %c0_i32 = arith.constant 0 : i32
    %c0_i32_0 = arith.constant 0 : i32
    return %arg0, %c0_i32 : i32, i32
  }
  func.func @transform_8(%arg0: i32) -> (i32, i32) {
    %c0_i32 = arith.constant 0 : i32
    %c0_i32_0 = arith.constant 0 : i32
    return %arg0, %c0_i32 : i32, i32
  }
  func.func @transform_9(%arg0: i32) -> (i32, i32) {
    %c0_i32 = arith.constant 0 : i32
    %c0_i32_0 = arith.constant 0 : i32
    %c0_i32_1 = arith.constant 0 : i32
    return %c0_i32, %c0_i32_0 : i32, i32
  }
}

</mosaic_0001>

<llo_original>
// kernel: multitask_forward.1
$region0: #{multitask_forward.1}
  #allocation0 [shape = 'u32[]', space=smem, size = 0x4, offset = 0x4, fixed_abs, tag = 'smem constant byte address 0x4 - core index']
  #allocation1 [shape = 'u32[144,128]{1,0:T(1,128)}', space=vmem, size = 0x12000, scoped, tag = 'internal scratch']
  #allocation2 [shape = 'f32[1,1]{1,0:T(1,128)}', space=vmem, size = 0x200, scoped, tag = 'scratch operand']
  #allocation3 [shape = 'f32[1,1]{1,0:T(1,128)}', space=vmem, size = 0x200, scoped, tag = 'scratch operand']
  #allocation4 [shape = 'f32[1,1]{1,0:T(1,128)}', space=vmem, size = 0x200, scoped, tag = 'scratch operand']
  #allocation5 [shape = 'f32[1,1]{1,0:T(1,128)}', space=vmem, size = 0x200, scoped, tag = 'scratch operand']
  %s0 = inlined_call_operand.vmem [shape: bf16[8,768], index: 0, kind: input, shape index: {}]
  %s1 = inlined_call_operand.vmem [shape: bf16[8,16], index: 1, kind: input, shape index: {}]
  %s2 = inlined_call_operand.hbm [shape: bf16[768,768], index: 2, kind: input, shape index: {}]
  %s3 = inlined_call_operand.hbm [shape: bf16[16,768], index: 3, kind: input, shape index: {}]
  %s4 = inlined_call_operand.hbm [shape: f32[1,768], index: 4, kind: input, shape index: {}]
  %s5 = inlined_call_operand.hbm [shape: bf16[768,128], index: 5, kind: input, shape index: {}]
  %s6 = inlined_call_operand.hbm [shape: f32[1,128], index: 6, kind: input, shape index: {}]
  %s7 = inlined_call_operand.vmem [shape: s32[8,1], index: 7, kind: input, shape index: {}]
  %s8 = inlined_call_operand.hbm [shape: f32[8,128], index: 8, kind: output, shape index: {0}]
  %s9 = inlined_call_operand.hbm [shape: f32[1,1], index: 9, kind: output, shape index: {1}]
  %10 = xla_tuple %s8, %s9
  %s11 = sld [smem:[#allocation0]]
  $region78: #{multitask_forward.1} parent=0
    _
  %s13 = ssub.s32 1, %s11
  %s14 = scalar_select 0, %s13, %s11
  $region1: #{multitask_forward.1} parent=0
    #allocation6 [shape = 'u8[1179648]{0}', space=vmem, size = 0x120000, scoped, tag = 'input window, operand 2, single buffered']
    #allocation7 [shape = 's32[1]{0}', space=sflag, size = 0x4, scoped, tag = 'scoped memory for multitask_forward.1']
    #allocation8 [shape = 's32[1]{0}', space=sflag, size = 0x4, scoped, tag = 'scoped memory for multitask_forward.1']
    #allocation9 [shape = 'u8[24576]{0}', space=vmem, size = 0x6000, scoped, tag = 'input window, operand 3, single buffered']
    #allocation10 [shape = 's32[1]{0}', space=sflag, size = 0x4, scoped, tag = 'scoped memory for multitask_forward.1']
    #allocation11 [shape = 'u8[3072]{0}', space=vmem, size = 0xc00, scoped, tag = 'input window, operand 4, single buffered']
    #allocation12 [shape = 'u8[196608]{0}', space=vmem, size = 0x30000, scoped, tag = 'input window, operand 5, single buffered']
    #allocation13 [shape = 's32[1]{0}', space=sflag, size = 0x4, scoped, tag = 'scoped memory for multitask_forward.1']
    #allocation14 [shape = 'u8[512]{0}', space=vmem, size = 0x400, scoped, tag = 'input window, operand 6, single buffered']
    #allocation15 [shape = 'u8[4096]{0}', space=vmem, size = 0x1000, scoped, tag = 'output window, operand 0, single buffered']
    #allocation16 [shape = 'u8[512]{0}', space=vmem, size = 0x400, scoped, tag = 'output window, operand 1, single buffered']
    #allocation17 [shape = 's32[1]{0}', space=sflag, size = 0x4, scoped, tag = 'scoped memory for multitask_forward.1']
    %15 = vsyncpa [#allocation7], 0
    %16 = vsyncpa [#allocation10], 0
    %17 = vsyncpa [#allocation13], 0
    %18 = vsyncpa [#allocation8], 0
    %19 = vsyncpa [#allocation17], 0
    // Predicated region
    $region2: #{multitask_forward.1} parent=1 // pred_check
      _
    $region3: #{multitask_forward.1} parent=1 // pred_check_branch
      %21 = sbr.rel (0) target = $region5
    $region4: #{multitask_forward.1} parent=1 // pred_region
      _
    $region5: #{multitask_forward.1} parent=1 // pred_fallthru
      _
    // Predicated region
    $region6: #{multitask_forward.1} parent=1 // pred_check
      _
    $region7: #{multitask_forward.1} parent=1 // pred_check_branch
      %23 = sbr.rel (0) target = $region9
    $region8: #{multitask_forward.1} parent=1 // pred_region
      _
    $region9: #{multitask_forward.1} parent=1 // pred_fallthru
      _
    // Predicated region
    $region10: #{multitask_forward.1} parent=1 // pred_check
      _
    $region11: #{multitask_forward.1} parent=1 // pred_check_branch
      %25 = sbr.rel (0) target = $region13
    $region12: #{multitask_forward.1} parent=1 // pred_region
      %s27 = ssub.s32 36864, 36864
      %28 = vsyncadd [#allocation7], %s27
      %s29 = sshll.u32 [#allocation6], 4
      %s30 = int_to_ptr.vmem [resolvable:$true] %s29
      %35 = dma.hbm_to_vmem [thread:$0]  %s2, 36864, %s30, [#allocation7], 384, 384, 24
    $region13: #{multitask_forward.1} parent=1 // pred_fallthru
      _
    // Predicated region
    $region14: #{multitask_forward.1} parent=1 // pred_check
      _
    $region15: #{multitask_forward.1} parent=1 // pred_check_branch
      %37 = sbr.rel (0) target = $region17
    $region16: #{multitask_forward.1} parent=1 // pred_region
      %s39 = ssub.s32 768, 768
      %40 = vsyncadd [#allocation10], %s39
      %s41 = sshll.u32 [#allocation9], 4
      %s42 = int_to_ptr.vmem [resolvable:$true] %s41
      %47 = dma.hbm_to_vmem [thread:$0]  %s3, 768, %s42, [#allocation10], 384, 384, 24
    $region17: #{multitask_forward.1} parent=1 // pred_fallthru
      _
    // Predicated region
    $region18: #{multitask_forward.1} parent=1 // pred_check
      _
    $region19: #{multitask_forward.1} parent=1 // pred_check_branch
      %49 = sbr.rel (0) target = $region21
    $region20: #{multitask_forward.1} parent=1 // pred_region
      %s51 = ssub.s32 96, 96
      %52 = vsyncadd [#allocation10], %s51
      %s54 = sshll.u32 [#allocation11], 4
      %s55 = int_to_ptr.vmem [resolvable:$true] %s54
      %57 = dma.hbm_to_vmem [thread:$0]  %s4, 96, %s55, [#allocation10]
    $region21: #{multitask_forward.1} parent=1 // pred_fallthru
      _
    // Predicated region
    $region22: #{multitask_forward.1} parent=1 // pred_check
      _
    $region23: #{multitask_forward.1} parent=1 // pred_check_branch
      %59 = sbr.rel (0) target = $region25
    $region24: #{multitask_forward.1} parent=1 // pred_region
      %s61 = ssub.s32 6144, 6144
      %62 = vsyncadd [#allocation13], %s61
      %s63 = sshll.u32 [#allocation12], 4
      %s64 = int_to_ptr.vmem [resolvable:$true] %s63
      %69 = dma.hbm_to_vmem [thread:$0]  %s5, 6144, %s64, [#allocation13], 64, 64, 4
    $region25: #{multitask_forward.1} parent=1 // pred_fallthru
      _
    // Predicated region
    $region26: #{multitask_forward.1} parent=1 // pred_check
      _
    $region27: #{multitask_forward.1} parent=1 // pred_check_branch
      %71 = sbr.rel (0) target = $region29
    $region28: #{multitask_forward.1} parent=1 // pred_region
      %s73 = ssub.s32 16, 16
      %74 = vsyncadd [#allocation13], %s73
      %s76 = sshll.u32 [#allocation14], 4
      %s77 = int_to_ptr.vmem [resolvable:$true] %s76
      %79 = dma.hbm_to_vmem [thread:$0]  %s6, 16, %s77, [#allocation13]
    $region29: #{multitask_forward.1} parent=1 // pred_fallthru
      _
    // Predicated region
    $region30: #{multitask_forward.1} parent=1 // pred_check
      _
    $region31: #{multitask_forward.1} parent=1 // pred_check_branch
      %81 = sbr.rel (0) target = $region33
    $region32: #{multitask_forward.1} parent=1 // pred_region
      _
    $region33: #{multitask_forward.1} parent=1 // pred_fallthru
      _
    // Predicated region
    $region34: #{multitask_forward.1} parent=1 // pred_check
      _
    $region35: #{multitask_forward.1} parent=1 // pred_check_branch
      %83 = sbr.rel (0) target = $region37
    $region36: #{multitask_forward.1} parent=1 // pred_region
      %84 = dma.done [#allocation7], 36864
    $region37: #{multitask_forward.1} parent=1 // pred_fallthru
      _
    // Predicated region
    $region38: #{multitask_forward.1} parent=1 // pred_check
      _
    $region39: #{multitask_forward.1} parent=1 // pred_check_branch
      %86 = sbr.rel (0) target = $region41
    $region40: #{multitask_forward.1} parent=1 // pred_region
      %87 = dma.done [#allocation10], 768
    $region41: #{multitask_forward.1} parent=1 // pred_fallthru
      _
    // Predicated region
    $region42: #{multitask_forward.1} parent=1 // pred_check
      _
    $region43: #{multitask_forward.1} parent=1 // pred_check_branch
      %89 = sbr.rel (0) target = $region45
    $region44: #{multitask_forward.1} parent=1 // pred_region
      %90 = dma.done [#allocation10], 96
    $region45: #{multitask_forward.1} parent=1 // pred_fallthru
      _
    // Predicated region
    $region46: #{multitask_forward.1} parent=1 // pred_check
      _
    $region47: #{multitask_forward.1} parent=1 // pred_check_branch
      %92 = sbr.rel (0) target = $region49
    $region48: #{multitask_forward.1} parent=1 // pred_region
      %93 = dma.done [#allocation13], 6144
    $region49: #{multitask_forward.1} parent=1 // pred_fallthru
      _
    // Predicated region
    $region50: #{multitask_forward.1} parent=1 // pred_check
      _
    $region51: #{multitask_forward.1} parent=1 // pred_check_branch
      %95 = sbr.rel (0) target = $region53
    $region52: #{multitask_forward.1} parent=1 // pred_region
      %96 = dma.done [#allocation13], 16
    $region53: #{multitask_forward.1} parent=1 // pred_fallthru
      _
    %p98 = scmp.eq.s32.totalorder 0, 0
    // Predicated region
    $region54: #{multitask_forward.1} parent=1 // pred_check
      %p99 = pneg %p98
    $region55: #{multitask_forward.1} parent=1 // pred_check_branch
      %101 = sbr.rel (%p99) target = $region57
    $region56: #{multitask_forward.1} parent=1 // pred_region
      %vm102 = vcmask 0
      %103 = vst.msk [vmem:[#allocation2] sm:$0x1] %vm102, 0.0
      %104 = vst.msk [vmem:[#allocation3] sm:$0x1] %vm102, 0.0
      %105 = vst.msk [vmem:[#allocation4] sm:$0x1] %vm102, 0.0
      %106 = vst.msk [vmem:[#allocation5] sm:$0x1] %vm102, 0.0
    $region57: #{multitask_forward.1} parent=1 // pred_fallthru
      _
    %v107 = vld [vmem:[%s0] sm:$0xff]
    %v108 = vld [vmem:[%s0 + $0x8] sm:$0xff]
    %v109 = vld [vmem:[%s0 + $0x10] sm:$0xff]
    %v110 = vld [vmem:[#allocation6] sm:$0xff]
    %v111 = vld [vmem:[#allocation6 + $0x8] sm:$0xff]
    %v112 = vld [vmem:[#allocation6 + $0x10] sm:$0xff]
    %v113 = vld [vmem:[#allocation6 + $0x18] sm:$0xff]
    %v114 = vld [vmem:[#allocation6 + $0x20] sm:$0xff]
    %v115 = vld [vmem:[#allocation6 + $0x28] sm:$0xff]
    %v116 = vld [vmem:[#allocation6 + $0x30] sm:$0xff]
    %v117 = vld [vmem:[#allocation6 + $0x38] sm:$0xff]
    %v118 = vld [vmem:[#allocation6 + $0x40] sm:$0xff]
    %v119 = vld [vmem:[#allocation6 + $0x48] sm:$0xff]
    %v120 = vld [vmem:[#allocation6 + $0x50] sm:$0xff]
    %v121 = vld [vmem:[#allocation6 + $0x58] sm:$0xff]
    %v122 = vld [vmem:[#allocation6 + $0x60] sm:$0xff]
    %v123 = vld [vmem:[#allocation6 + $0x68] sm:$0xff]
    %v124 = vld [vmem:[#allocation6 + $0x70] sm:$0xff]
    %v125 = vld [vmem:[#allocation6 + $0x78] sm:$0xff]
    %v126 = vld [vmem:[#allocation6 + $0x80] sm:$0xff]
    %v127 = vld [vmem:[#allocation6 + $0x88] sm:$0xff]
    %v128 = vld [vmem:[#allocation6 + $0x90] sm:$0xff]
    %v129 = vld [vmem:[#allocation6 + $0x98] sm:$0xff]
    %v130 = vld [vmem:[#allocation6 + $0xa0] sm:$0xff]
    %v131 = vld [vmem:[#allocation6 + $0xa8] sm:$0xff]
    %v132 = vld [vmem:[#allocation6 + $0xb0] sm:$0xff]
    %v133 = vld [vmem:[#allocation6 + $0xb8] sm:$0xff]
    %v134 = vld [vmem:[#allocation6 + $0xc0] sm:$0xff]
    %v135 = vld [vmem:[#allocation6 + $0xc8] sm:$0xff]
    %v136 = vld [vmem:[#allocation6 + $0xd0] sm:$0xff]
    %v137 = vld [vmem:[#allocation6 + $0xd8] sm:$0xff]
    %v138 = vld [vmem:[#allocation6 + $0xe0] sm:$0xff]
    %v139 = vld [vmem:[#allocation6 + $0xe8] sm:$0xff]
    %v140 = vld [vmem:[#allocation6 + $0xf0] sm:$0xff]
    %v141 = vld [vmem:[#allocation6 + $0xf8] sm:$0xff]
    %v142 = vld [vmem:[#allocation6 + $0x100] sm:$0xff]
    %v143 = vld [vmem:[#allocation6 + $0x108] sm:$0xff]
    %v144 = vld [vmem:[#allocation6 + $0x110] sm:$0xff]
    %v145 = vld [vmem:[#allocation6 + $0x118] sm:$0xff]
    %v146 = vld [vmem:[#allocation6 + $0x120] sm:$0xff]
    %v147 = vld [vmem:[#allocation6 + $0x128] sm:$0xff]
    %v148 = vld [vmem:[#allocation6 + $0x130] sm:$0xff]
    %v149 = vld [vmem:[#allocation6 + $0x138] sm:$0xff]
    %v150 = vld [vmem:[#allocation6 + $0x140] sm:$0xff]
    %v151 = vld [vmem:[#allocation6 + $0x148] sm:$0xff]
    %v152 = vld [vmem:[#allocation6 + $0x150] sm:$0xff]
    %v153 = vld [vmem:[#allocation6 + $0x158] sm:$0xff]
    %v154 = vld [vmem:[#allocation6 + $0x160] sm:$0xff]
    %v155 = vld [vmem:[#allocation6 + $0x168] sm:$0xff]
    %v156 = vld [vmem:[#allocation6 + $0x170] sm:$0xff]
    %v157 = vld [vmem:[#allocation6 + $0x178] sm:$0xff]
    %v158 = vld [vmem:[#allocation6 + $0x180] sm:$0xff]
    %v159 = vld [vmem:[#allocation6 + $0x188] sm:$0xff]
    %v160 = vld [vmem:[#allocation6 + $0x190] sm:$0xff]
    %v161 = vld [vmem:[#allocation6 + $0x198] sm:$0xff]
    %v162 = vld [vmem:[#allocation6 + $0x1a0] sm:$0xff]
    %v163 = vld [vmem:[#allocation6 + $0x1a8] sm:$0xff]
    %v164 = vld [vmem:[#allocation6 + $0x1b0] sm:$0xff]
    %v165 = vld [vmem:[#allocation6 + $0x1b8] sm:$0xff]
    %v166 = vld [vmem:[#allocation6 + $0x1c0] sm:$0xff]
    %v167 = vld [vmem:[#allocation6 + $0x1c8] sm:$0xff]
    %v168 = vld [vmem:[#allocation6 + $0x1d0] sm:$0xff]
    %v169 = vld [vmem:[#allocation6 + $0x1d8] sm:$0xff]
    %v170 = vld [vmem:[#allocation6 + $0x1e0] sm:$0xff]
    %v171 = vld [vmem:[#allocation6 + $0x1e8] sm:$0xff]
    %v172 = vld [vmem:[#allocation6 + $0x1f0] sm:$0xff]
    %v173 = vld [vmem:[#allocation6 + $0x1f8] sm:$0xff]
    %v174 = vld [vmem:[#allocation6 + $0x200] sm:$0xff]
    %v175 = vld [vmem:[#allocation6 + $0x208] sm:$0xff]
    %v176 = vld [vmem:[#allocation6 + $0x210] sm:$0xff]
    %v177 = vld [vmem:[#allocation6 + $0x218] sm:$0xff]
    %v178 = vld [vmem:[#allocation6 + $0x220] sm:$0xff]
    %v179 = vld [vmem:[#allocation6 + $0x228] sm:$0xff]
    %v180 = vld [vmem:[#allocation6 + $0x230] sm:$0xff]
    %v181 = vld [vmem:[#allocation6 + $0x238] sm:$0xff]
    %v182 = vld [vmem:[#allocation6 + $0x240] sm:$0xff]
    %v183 = vld [vmem:[#allocation6 + $0x248] sm:$0xff]
    %v184 = vld [vmem:[#allocation6 + $0x250] sm:$0xff]
    %v185 = vld [vmem:[#allocation6 + $0x258] sm:$0xff]
    %v186 = vld [vmem:[#allocation6 + $0x260] sm:$0xff]
    %v187 = vld [vmem:[#allocation6 + $0x268] sm:$0xff]
    %v188 = vld [vmem:[#allocation6 + $0x270] sm:$0xff]
    %v189 = vld [vmem:[#allocation6 + $0x278] sm:$0xff]
    %v190 = vld [vmem:[#allocation6 + $0x280] sm:$0xff]
    %v191 = vld [vmem:[#allocation6 + $0x288] sm:$0xff]
    %v192 = vld [vmem:[#allocation6 + $0x290] sm:$0xff]
    %v193 = vld [vmem:[#allocation6 + $0x298] sm:$0xff]
    %v194 = vld [vmem:[#allocation6 + $0x2a0] sm:$0xff]
    %v195 = vld [vmem:[#allocation6 + $0x2a8] sm:$0xff]
    %v196 = vld [vmem:[#allocation6 + $0x2b0] sm:$0xff]
    %v197 = vld [vmem:[#allocation6 + $0x2b8] sm:$0xff]
    %v198 = vld [vmem:[#allocation6 + $0x2c0] sm:$0xff]
    %v199 = vld [vmem:[#allocation6 + $0x2c8] sm:$0xff]
    %v200 = vld [vmem:[#allocation6 + $0x2d0] sm:$0xff]
    %v201 = vld [vmem:[#allocation6 + $0x2d8] sm:$0xff]
    %v202 = vld [vmem:[#allocation6 + $0x2e0] sm:$0xff]
    %v203 = vld [vmem:[#allocation6 + $0x2e8] sm:$0xff]
    %v204 = vld [vmem:[#allocation6 + $0x2f0] sm:$0xff]
    %v205 = vld [vmem:[#allocation6 + $0x2f8] sm:$0xff]
    %v206 = vld [vmem:[#allocation6 + $0x300] sm:$0xff]
    %v207 = vld [vmem:[#allocation6 + $0x308] sm:$0xff]
    %v208 = vld [vmem:[#allocation6 + $0x310] sm:$0xff]
    %v209 = vld [vmem:[#allocation6 + $0x318] sm:$0xff]
    %v210 = vld [vmem:[#allocation6 + $0x320] sm:$0xff]
    %v211 = vld [vmem:[#allocation6 + $0x328] sm:$0xff]
    %v212 = vld [vmem:[#allocation6 + $0x330] sm:$0xff]
    %v213 = vld [vmem:[#allocation6 + $0x338] sm:$0xff]
    %v214 = vld [vmem:[#allocation6 + $0x340] sm:$0xff]
    %v215 = vld [vmem:[#allocation6 + $0x348] sm:$0xff]
    %v216 = vld [vmem:[#allocation6 + $0x350] sm:$0xff]
    %v217 = vld [vmem:[#allocation6 + $0x358] sm:$0xff]
    %v218 = vld [vmem:[#allocation6 + $0x360] sm:$0xff]
    %v219 = vld [vmem:[#allocation6 + $0x368] sm:$0xff]
    %v220 = vld [vmem:[#allocation6 + $0x370] sm:$0xff]
    %v221 = vld [vmem:[#allocation6 + $0x378] sm:$0xff]
    %v222 = vld [vmem:[#allocation6 + $0x380] sm:$0xff]
    %v223 = vld [vmem:[#allocation6 + $0x388] sm:$0xff]
    %v224 = vld [vmem:[#allocation6 + $0x390] sm:$0xff]
    %v225 = vld [vmem:[#allocation6 + $0x398] sm:$0xff]
    %v226 = vld [vmem:[#allocation6 + $0x3a0] sm:$0xff]
    %v227 = vld [vmem:[#allocation6 + $0x3a8] sm:$0xff]
    %v228 = vld [vmem:[#allocation6 + $0x3b0] sm:$0xff]
    %v229 = vld [vmem:[#allocation6 + $0x3b8] sm:$0xff]
    %v230 = vld [vmem:[#allocation6 + $0x3c0] sm:$0xff]
    %v231 = vld [vmem:[#allocation6 + $0x3c8] sm:$0xff]
    %v232 = vld [vmem:[#allocation6 + $0x3d0] sm:$0xff]
    %v233 = vld [vmem:[#allocation6 + $0x3d8] sm:$0xff]
    %v234 = vld [vmem:[#allocation6 + $0x3e0] sm:$0xff]
    %v235 = vld [vmem:[#allocation6 + $0x3e8] sm:$0xff]
    %v236 = vld [vmem:[#allocation6 + $0x3f0] sm:$0xff]
    %v237 = vld [vmem:[#allocation6 + $0x3f8] sm:$0xff]
    %v238 = vld [vmem:[#allocation6 + $0x400] sm:$0xff]
    %v239 = vld [vmem:[#allocation6 + $0x408] sm:$0xff]
    %v240 = vld [vmem:[#allocation6 + $0x410] sm:$0xff]
    %v241 = vld [vmem:[#allocation6 + $0x418] sm:$0xff]
    %v242 = vld [vmem:[#allocation6 + $0x420] sm:$0xff]
    %v243 = vld [vmem:[#allocation6 + $0x428] sm:$0xff]
    %v244 = vld [vmem:[#allocation6 + $0x430] sm:$0xff]
    %v245 = vld [vmem:[#allocation6 + $0x438] sm:$0xff]
    %v246 = vld [vmem:[#allocation6 + $0x440] sm:$0xff]
    %v247 = vld [vmem:[#allocation6 + $0x448] sm:$0xff]
    %v248 = vld [vmem:[#allocation6 + $0x450] sm:$0xff]
    %v249 = vld [vmem:[#allocation6 + $0x458] sm:$0xff]
    %v250 = vld [vmem:[#allocation6 + $0x460] sm:$0xff]
    %v251 = vld [vmem:[#allocation6 + $0x468] sm:$0xff]
    %v252 = vld [vmem:[#allocation6 + $0x470] sm:$0xff]
    %v253 = vld [vmem:[#allocation6 + $0x478] sm:$0xff]
    %v254 = vld [vmem:[#allocation6 + $0x480] sm:$0xff]
    %v255 = vld [vmem:[#allocation6 + $0x488] sm:$0xff]
    %v256 = vld [vmem:[#allocation6 + $0x490] sm:$0xff]
    %v257 = vld [vmem:[#allocation6 + $0x498] sm:$0xff]
    %v258 = vld [vmem:[#allocation6 + $0x4a0] sm:$0xff]
    %v259 = vld [vmem:[#allocation6 + $0x4a8] sm:$0xff]
    %v260 = vld [vmem:[#allocation6 + $0x4b0] sm:$0xff]
    %v261 = vld [vmem:[#allocation6 + $0x4b8] sm:$0xff]
    %v262 = vld [vmem:[#allocation6 + $0x4c0] sm:$0xff]
    %v263 = vld [vmem:[#allocation6 + $0x4c8] sm:$0xff]
    %v264 = vld [vmem:[#allocation6 + $0x4d0] sm:$0xff]
    %v265 = vld [vmem:[#allocation6 + $0x4d8] sm:$0xff]
    %v266 = vld [vmem:[#allocation6 + $0x4e0] sm:$0xff]
    %v267 = vld [vmem:[#allocation6 + $0x4e8] sm:$0xff]
    %v268 = vld [vmem:[#allocation6 + $0x4f0] sm:$0xff]
    %v269 = vld [vmem:[#allocation6 + $0x4f8] sm:$0xff]
    %v270 = vld [vmem:[#allocation6 + $0x500] sm:$0xff]
    %v271 = vld [vmem:[#allocation6 + $0x508] sm:$0xff]
    %v272 = vld [vmem:[#allocation6 + $0x510] sm:$0xff]
    %v273 = vld [vmem:[#allocation6 + $0x518] sm:$0xff]
    %v274 = vld [vmem:[#allocation6 + $0x520] sm:$0xff]
    %v275 = vld [vmem:[#allocation6 + $0x528] sm:$0xff]
    %v276 = vld [vmem:[#allocation6 + $0x530] sm:$0xff]
    %v277 = vld [vmem:[#allocation6 + $0x538] sm:$0xff]
    %v278 = vld [vmem:[#allocation6 + $0x540] sm:$0xff]
    %v279 = vld [vmem:[#allocation6 + $0x548] sm:$0xff]
    %v280 = vld [vmem:[#allocation6 + $0x550] sm:$0xff]
    %v281 = vld [vmem:[#allocation6 + $0x558] sm:$0xff]
    %v282 = vld [vmem:[#allocation6 + $0x560] sm:$0xff]
    %v283 = vld [vmem:[#allocation6 + $0x568] sm:$0xff]
    %v284 = vld [vmem:[#allocation6 + $0x570] sm:$0xff]
    %v285 = vld [vmem:[#allocation6 + $0x578] sm:$0xff]
    %v286 = vld [vmem:[#allocation6 + $0x580] sm:$0xff]
    %v287 = vld [vmem:[#allocation6 + $0x588] sm:$0xff]
    %v288 = vld [vmem:[#allocation6 + $0x590] sm:$0xff]
    %v289 = vld [vmem:[#allocation6 + $0x598] sm:$0xff]
    %v290 = vld [vmem:[#allocation6 + $0x5a0] sm:$0xff]
    %v291 = vld [vmem:[#allocation6 + $0x5a8] sm:$0xff]
    %v292 = vld [vmem:[#allocation6 + $0x5b0] sm:$0xff]
    %v293 = vld [vmem:[#allocation6 + $0x5b8] sm:$0xff]
    %v294 = vld [vmem:[#allocation6 + $0x5c0] sm:$0xff]
    %v295 = vld [vmem:[#allocation6 + $0x5c8] sm:$0xff]
    %v296 = vld [vmem:[#allocation6 + $0x5d0] sm:$0xff]
    %v297 = vld [vmem:[#allocation6 + $0x5d8] sm:$0xff]
    %v298 = vld [vmem:[#allocation6 + $0x5e0] sm:$0xff]
    %v299 = vld [vmem:[#allocation6 + $0x5e8] sm:$0xff]
    %v300 = vld [vmem:[#allocation6 + $0x5f0] sm:$0xff]
    %v301 = vld [vmem:[#allocation6 + $0x5f8] sm:$0xff]
    %v302 = vld [vmem:[#allocation6 + $0x600] sm:$0xff]
    %v303 = vld [vmem:[#allocation6 + $0x608] sm:$0xff]
    %v304 = vld [vmem:[#allocation6 + $0x610] sm:$0xff]
    %v305 = vld [vmem:[#allocation6 + $0x618] sm:$0xff]
    %v306 = vld [vmem:[#allocation6 + $0x620] sm:$0xff]
    %v307 = vld [vmem:[#allocation6 + $0x628] sm:$0xff]
    %v308 = vld [vmem:[#allocation6 + $0x630] sm:$0xff]
    %v309 = vld [vmem:[#allocation6 + $0x638] sm:$0xff]
    %v310 = vld [vmem:[#allocation6 + $0x640] sm:$0xff]
    %v311 = vld [vmem:[#allocation6 + $0x648] sm:$0xff]
    %v312 = vld [vmem:[#allocation6 + $0x650] sm:$0xff]
    %v313 = vld [vmem:[#allocation6 + $0x658] sm:$0xff]
    %v314 = vld [vmem:[#allocation6 + $0x660] sm:$0xff]
    %v315 = vld [vmem:[#allocation6 + $0x668] sm:$0xff]
    %v316 = vld [vmem:[#allocation6 + $0x670] sm:$0xff]
    %v317 = vld [vmem:[#allocation6 + $0x678] sm:$0xff]
    %v318 = vld [vmem:[#allocation6 + $0x680] sm:$0xff]
    %v319 = vld [vmem:[#allocation6 + $0x688] sm:$0xff]
    %v320 = vld [vmem:[#allocation6 + $0x690] sm:$0xff]
    %v321 = vld [vmem:[#allocation6 + $0x698] sm:$0xff]
    %v322 = vld [vmem:[#allocation6 + $0x6a0] sm:$0xff]
    %v323 = vld [vmem:[#allocation6 + $0x6a8] sm:$0xff]
    %v324 = vld [vmem:[#allocation6 + $0x6b0] sm:$0xff]
    %v325 = vld [vmem:[#allocation6 + $0x6b8] sm:$0xff]
    %v326 = vld [vmem:[#allocation6 + $0x6c0] sm:$0xff]
    %v327 = vld [vmem:[#allocation6 + $0x6c8] sm:$0xff]
    %v328 = vld [vmem:[#allocation6 + $0x6d0] sm:$0xff]
    %v329 = vld [vmem:[#allocation6 + $0x6d8] sm:$0xff]
    %v330 = vld [vmem:[#allocation6 + $0x6e0] sm:$0xff]
    %v331 = vld [vmem:[#allocation6 + $0x6e8] sm:$0xff]
    %v332 = vld [vmem:[#allocation6 + $0x6f0] sm:$0xff]
    %v333 = vld [vmem:[#allocation6 + $0x6f8] sm:$0xff]
    %v334 = vld [vmem:[#allocation6 + $0x700] sm:$0xff]
    %v335 = vld [vmem:[#allocation6 + $0x708] sm:$0xff]
    %v336 = vld [vmem:[#allocation6 + $0x710] sm:$0xff]
    %v337 = vld [vmem:[#allocation6 + $0x718] sm:$0xff]
    %v338 = vld [vmem:[#allocation6 + $0x720] sm:$0xff]
    %v339 = vld [vmem:[#allocation6 + $0x728] sm:$0xff]
    %v340 = vld [vmem:[#allocation6 + $0x730] sm:$0xff]
    %v341 = vld [vmem:[#allocation6 + $0x738] sm:$0xff]
    %v342 = vld [vmem:[#allocation6 + $0x740] sm:$0xff]
    %v343 = vld [vmem:[#allocation6 + $0x748] sm:$0xff]
    %v344 = vld [vmem:[#allocation6 + $0x750] sm:$0xff]
    %v345 = vld [vmem:[#allocation6 + $0x758] sm:$0xff]
    %v346 = vld [vmem:[#allocation6 + $0x760] sm:$0xff]
    %v347 = vld [vmem:[#allocation6 + $0x768] sm:$0xff]
    %v348 = vld [vmem:[#allocation6 + $0x770] sm:$0xff]
    %v349 = vld [vmem:[#allocation6 + $0x778] sm:$0xff]
    %v350 = vld [vmem:[#allocation6 + $0x780] sm:$0xff]
    %v351 = vld [vmem:[#allocation6 + $0x788] sm:$0xff]
    %v352 = vld [vmem:[#allocation6 + $0x790] sm:$0xff]
    %v353 = vld [vmem:[#allocation6 + $0x798] sm:$0xff]
    %v354 = vld [vmem:[#allocation6 + $0x7a0] sm:$0xff]
    %v355 = vld [vmem:[#allocation6 + $0x7a8] sm:$0xff]
    %v356 = vld [vmem:[#allocation6 + $0x7b0] sm:$0xff]
    %v357 = vld [vmem:[#allocation6 + $0x7b8] sm:$0xff]
    %v358 = vld [vmem:[#allocation6 + $0x7c0] sm:$0xff]
    %v359 = vld [vmem:[#allocation6 + $0x7c8] sm:$0xff]
    %v360 = vld [vmem:[#allocation6 + $0x7d0] sm:$0xff]
    %v361 = vld [vmem:[#allocation6 + $0x7d8] sm:$0xff]
    %v362 = vld [vmem:[#allocation6 + $0x7e0] sm:$0xff]
    %v363 = vld [vmem:[#allocation6 + $0x7e8] sm:$0xff]
    %v364 = vld [vmem:[#allocation6 + $0x7f0] sm:$0xff]
    %v365 = vld [vmem:[#allocation6 + $0x7f8] sm:$0xff]
    %v366 = vld [vmem:[#allocation6 + $0x800] sm:$0xff]
    %v367 = vld [vmem:[#allocation6 + $0x808] sm:$0xff]
    %v368 = vld [vmem:[#allocation6 + $0x810] sm:$0xff]
    %v369 = vld [vmem:[#allocation6 + $0x818] sm:$0xff]
    %v370 = vld [vmem:[#allocation6 + $0x820] sm:$0xff]
    %v371 = vld [vmem:[#allocation6 + $0x828] sm:$0xff]
    %v372 = vld [vmem:[#allocation6 + $0x830] sm:$0xff]
    %v373 = vld [vmem:[#allocation6 + $0x838] sm:$0xff]
    %v374 = vld [vmem:[#allocation6 + $0x840] sm:$0xff]
    %v375 = vld [vmem:[#allocation6 + $0x848] sm:$0xff]
    %v376 = vld [vmem:[#allocation6 + $0x850] sm:$0xff]
    %v377 = vld [vmem:[#allocation6 + $0x858] sm:$0xff]
    %v378 = vld [vmem:[#allocation6 + $0x860] sm:$0xff]
    %v379 = vld [vmem:[#allocation6 + $0x868] sm:$0xff]
    %v380 = vld [vmem:[#allocation6 + $0x870] sm:$0xff]
    %v381 = vld [vmem:[#allocation6 + $0x878] sm:$0xff]
    %v382 = vld [vmem:[#allocation6 + $0x880] sm:$0xff]
    %v383 = vld [vmem:[#allocation6 + $0x888] sm:$0xff]
    %v384 = vld [vmem:[#allocation6 + $0x890] sm:$0xff]
    %v385 = vld [vmem:[#allocation6 + $0x898] sm:$0xff]
    %v386 = vld [vmem:[#allocation6 + $0x8a0] sm:$0xff]
    %v387 = vld [vmem:[#allocation6 + $0x8a8] sm:$0xff]
    %v388 = vld [vmem:[#allocation6 + $0x8b0] sm:$0xff]
    %v389 = vld [vmem:[#allocation6 + $0x8b8] sm:$0xff]
    %v390 = vld [vmem:[#allocation6 + $0x8c0] sm:$0xff]
    %v391 = vld [vmem:[#allocation6 + $0x8c8] sm:$0xff]
    %v392 = vld [vmem:[#allocation6 + $0x8d0] sm:$0xff]
    %v393 = vld [vmem:[#allocation6 + $0x8d8] sm:$0xff]
    %v394 = vld [vmem:[#allocation6 + $0x8e0] sm:$0xff]
    %v395 = vld [vmem:[#allocation6 + $0x8e8] sm:$0xff]
    %v396 = vld [vmem:[#allocation6 + $0x8f0] sm:$0xff]
    %v397 = vld [vmem:[#allocation6 + $0x8f8] sm:$0xff]
    %v398 = vld [vmem:[%s1] sm:$0xf]
    %v399 = vld [vmem:[#allocation9] sm:$0xff]
    %v400 = vld [vmem:[#allocation9 + $0x8] sm:$0xff]
    %v401 = vld [vmem:[#allocation9 + $0x10] sm:$0xff]
    %v402 = vld [vmem:[#allocation9 + $0x18] sm:$0xff]
    %v403 = vld [vmem:[#allocation9 + $0x20] sm:$0xff]
    %v404 = vld [vmem:[#allocation9 + $0x28] sm:$0xff]
    %v411 = vunpack.c.l.b16 %v399
    %v412 = vunpack.c.h.b16 %v399
    %v413 = vunpack.c.l.b16 %v400
    %v414 = vunpack.c.h.b16 %v400
    %v415 = vunpack.c.l.b16 %v401
    %v416 = vunpack.c.h.b16 %v401
    %v417 = vunpack.c.l.b16 %v402
    %v418 = vunpack.c.h.b16 %v402
    %v419 = vunpack.c.l.b16 %v403
    %v420 = vunpack.c.h.b16 %v403
    %v421 = vunpack.c.l.b16 %v404
    %v422 = vunpack.c.h.b16 %v404
    %v423 = vpack.c.b16 %v417, %v411
    %v424 = vpack.c.b16 %v418, %v412
    %v425 = vpack.c.b16 %v419, %v413
    %v426 = vpack.c.b16 %v420, %v414
    %v427 = vpack.c.b16 %v421, %v415
    %v428 = vpack.c.b16 %v422, %v416
    %vm435 = vcmask 130048
    %v437 = vsel %vm435, %v398, 0
    %439 = vmatprep.subr.bf16.mxu0 0
    %440 = vmatpush1.bf16.msra.mxu0 0
    %441 = vmatprep.subr.bf16.mxu0 0
    %442 = vmatpush1.bf16.msra.mxu0 0
    %443 = vmatprep.subr.bf16.mxu0 0
    %444 = vmatpush1.bf16.msra.mxu0 0
    %445 = vmatprep.subr.bf16.mxu0 0
    %446 = vmatpush1.bf16.msra.mxu0 0
    %447 = vmatprep.subr.bf16.mxu0 0
    %448 = vmatpush1.bf16.msra.mxu0 0
    %449 = vmatprep.subr.bf16.mxu0 0
    %450 = vmatpush1.bf16.msra.mxu0 0
    %451 = vmatprep.subr.bf16.mxu0 0
    %452 = vmatpush1.bf16.msra.mxu0 0
    %453 = vmatprep.subr.bf16.mxu0 %v424
    %454 = vmatpush1.bf16.msra.mxu0 %v423
    %455 = vmatprep.subr.bf16.mxu0 0
    %456 = vmatpush2.bf16.msra.mxu0 0
    %457 = vmatprep.subr.bf16.mxu0 0
    %458 = vmatpush2.bf16.msra.mxu0 0
    %459 = vmatprep.subr.bf16.mxu0 0
    %460 = vmatpush2.bf16.msra.mxu0 0
    %461 = vmatprep.subr.bf16.mxu0 0
    %462 = vmatpush2.bf16.msra.mxu0 0
    %463 = vmatprep.subr.bf16.mxu0 0
    %464 = vmatpush2.bf16.msra.mxu0 0
    %465 = vmatprep.subr.bf16.mxu0 0
    %466 = vmatpush2.bf16.msra.mxu0 0
    %467 = vmatprep.subr.bf16.mxu0 0
    %468 = vmatpush2.bf16.msra.mxu0 0
    %469 = vmatprep.subr.bf16.mxu0 0
    %470 = vmatpush2.bf16.msra.mxu0 0
    %471 = vmatprep.mubr.bf16.mxu0 0
    %472 = vmatmul.mubr.bf16.gmra.mxu0 %v437
    %v473 = vpop.f32.mrf.mxu0
    %v474 = vadd.f32 0.0, %v473
    %v475 = vpop.f32.mrf.mxu0
    %v476 = vadd.f32 0.0, %v475
    %v477 = vpop.f32.mrf.mxu0
    %v478 = vpop.f32.mrf.mxu0
    %479 = vdwg.mxu0
    %480 = vmatprep.subr.bf16.mxu0 0
    %481 = vmatpush1.bf16.msra.mxu0 0
    %482 = vmatprep.subr.bf16.mxu0 0
    %483 = vmatpush1.bf16.msra.mxu0 0
    %484 = vmatprep.subr.bf16.mxu0 0
    %485 = vmatpush1.bf16.msra.mxu0 0
    %486 = vmatprep.subr.bf16.mxu0 0
    %487 = vmatpush1.bf16.msra.mxu0 0
    %488 = vmatprep.subr.bf16.mxu0 0
    %489 = vmatpush1.bf16.msra.mxu0 0
    %490 = vmatprep.subr.bf16.mxu0 0
    %491 = vmatpush1.bf16.msra.mxu0 0
    %492 = vmatprep.subr.bf16.mxu0 0
    %493 = vmatpush1.bf16.msra.mxu0 0
    %494 = vmatprep.subr.bf16.mxu0 %v426
    %495 = vmatpush1.bf16.msra.mxu0 %v425
    %496 = vmatprep.subr.bf16.mxu0 0
    %497 = vmatpush2.bf16.msra.mxu0 0
    %498 = vmatprep.subr.bf16.mxu0 0
    %499 = vmatpush2.bf16.msra.mxu0 0
    %500 = vmatprep.subr.bf16.mxu0 0
    %501 = vmatpush2.bf16.msra.mxu0 0
    %502 = vmatprep.subr.bf16.mxu0 0
    %503 = vmatpush2.bf16.msra.mxu0 0
    %504 = vmatprep.subr.bf16.mxu0 0
    %505 = vmatpush2.bf16.msra.mxu0 0
    %506 = vmatprep.subr.bf16.mxu0 0
    %507 = vmatpush2.bf16.msra.mxu0 0
    %508 = vmatprep.subr.bf16.mxu0 0
    %509 = vmatpush2.bf16.msra.mxu0 0
    %510 = vmatprep.subr.bf16.mxu0 0
    %511 = vmatpush2.bf16.msra.mxu0 0
    %512 = vmatprep.mubr.bf16.mxu0 0
    %513 = vmatmul.mubr.bf16.gmra.mxu0 %v437
    %v514 = vpop.f32.mrf.mxu0
    %v515 = vadd.f32 0.0, %v514
    %v516 = vpop.f32.mrf.mxu0
    %v517 = vadd.f32 0.0, %v516
    %v518 = vpop.f32.mrf.mxu0
    %v519 = vpop.f32.mrf.mxu0
    %520 = vdwg.mxu0
    %521 = vmatprep.subr.bf16.mxu0 0
    %522 = vmatpush1.bf16.msra.mxu0 0
    %523 = vmatprep.subr.bf16.mxu0 0
    %524 = vmatpush1.bf16.msra.mxu0 0
    %525 = vmatprep.subr.bf16.mxu0 0
    %526 = vmatpush1.bf16.msra.mxu0 0
    %527 = vmatprep.subr.bf16.mxu0 0
    %528 = vmatpush1.bf16.msra.mxu0 0
    %529 = vmatprep.subr.bf16.mxu0 0
    %530 = vmatpush1.bf16.msra.mxu0 0
    %531 = vmatprep.subr.bf16.mxu0 0
    %532 = vmatpush1.bf16.msra.mxu0 0
    %533 = vmatprep.subr.bf16.mxu0 0
    %534 = vmatpush1.bf16.msra.mxu0 0
    %535 = vmatprep.subr.bf16.mxu0 %v428
    %536 = vmatpush1.bf16.msra.mxu0 %v427
    %537 = vmatprep.subr.bf16.mxu0 0
    %538 = vmatpush2.bf16.msra.mxu0 0
    %539 = vmatprep.subr.bf16.mxu0 0
    %540 = vmatpush2.bf16.msra.mxu0 0
    %541 = vmatprep.subr.bf16.mxu0 0
    %542 = vmatpush2.bf16.msra.mxu0 0
    %543 = vmatprep.subr.bf16.mxu0 0
    %544 = vmatpush2.bf16.msra.mxu0 0
    %545 = vmatprep.subr.bf16.mxu0 0
    %546 = vmatpush2.bf16.msra.mxu0 0
    %547 = vmatprep.subr.bf16.mxu0 0
    %548 = vmatpush2.bf16.msra.mxu0 0
    %549 = vmatprep.subr.bf16.mxu0 0
    %550 = vmatpush2.bf16.msra.mxu0 0
    %551 = vmatprep.subr.bf16.mxu0 0
    %552 = vmatpush2.bf16.msra.mxu0 0
    %553 = vmatprep.mubr.bf16.mxu0 0
    %554 = vmatmul.mubr.bf16.gmra.mxu0 %v437
    %v555 = vpop.f32.mrf.mxu0
    %v556 = vadd.f32 0.0, %v555
    %v557 = vpop.f32.mrf.mxu0
    %v558 = vadd.f32 0.0, %v557
    %v559 = vpop.f32.mrf.mxu0
    %v560 = vpop.f32.mrf.mxu0
    %561 = vdwg.mxu0
    %v565 = vunpack.c.l.b16 %v107
    %v566 = vunpack.c.h.b16 %v107
    %v567 = vunpack.c.l.b16 %v108
    %v568 = vunpack.c.h.b16 %v108
    %v569 = vunpack.c.l.b16 %v109
    %v570 = vunpack.c.h.b16 %v109
    %v571 = vpack.c.b16 %v565, %v565
    %v572 = vpack.c.b16 %v566, %v566
    %v573 = vpack.c.b16 %v567, %v567
    %v574 = vpack.c.b16 %v568, %v568
    %v575 = vpack.c.b16 %v569, %v569
    %v576 = vpack.c.b16 %v570, %v570
    %v871 = vunpack.c.l.b16 %v110
    %v872 = vunpack.c.h.b16 %v110
    %v873 = vunpack.c.l.b16 %v111
    %v874 = vunpack.c.h.b16 %v111
    %v875 = vunpack.c.l.b16 %v112
    %v876 = vunpack.c.h.b16 %v112
    %v877 = vunpack.c.l.b16 %v113
    %v878 = vunpack.c.h.b16 %v113
    %v879 = vunpack.c.l.b16 %v114
    %v880 = vunpack.c.h.b16 %v114
    %v881 = vunpack.c.l.b16 %v115
    %v882 = vunpack.c.h.b16 %v115
    %v883 = vunpack.c.l.b16 %v116
    %v884 = vunpack.c.h.b16 %v116
    %v885 = vunpack.c.l.b16 %v117
    %v886 = vunpack.c.h.b16 %v117
    %v887 = vunpack.c.l.b16 %v118
    %v888 = vunpack.c.h.b16 %v118
    %v889 = vunpack.c.l.b16 %v119
    %v890 = vunpack.c.h.b16 %v119
    %v891 = vunpack.c.l.b16 %v120
    %v892 = vunpack.c.h.b16 %v120
    %v893 = vunpack.c.l.b16 %v121
    %v894 = vunpack.c.h.b16 %v121
    %v895 = vunpack.c.l.b16 %v122
    %v896 = vunpack.c.h.b16 %v122
    %v897 = vunpack.c.l.b16 %v123
    %v898 = vunpack.c.h.b16 %v123
    %v899 = vunpack.c.l.b16 %v124
    %v900 = vunpack.c.h.b16 %v124
    %v901 = vunpack.c.l.b16 %v125
    %v902 = vunpack.c.h.b16 %v125
    %v903 = vunpack.c.l.b16 %v126
    %v904 = vunpack.c.h.b16 %v126
    %v905 = vunpack.c.l.b16 %v127
    %v906 = vunpack.c.h.b16 %v127
    %v907 = vunpack.c.l.b16 %v128
    %v908 = vunpack.c.h.b16 %v128
    %v909 = vunpack.c.l.b16 %v129
    %v910 = vunpack.c.h.b16 %v129
    %v911 = vunpack.c.l.b16 %v130
    %v912 = vunpack.c.h.b16 %v130
    %v913 = vunpack.c.l.b16 %v131
    %v914 = vunpack.c.h.b16 %v131
    %v915 = vunpack.c.l.b16 %v132
    %v916 = vunpack.c.h.b16 %v132
    %v917 = vunpack.c.l.b16 %v133
    %v918 = vunpack.c.h.b16 %v133
    %v919 = vunpack.c.l.b16 %v134
    %v920 = vunpack.c.h.b16 %v134
    %v921 = vunpack.c.l.b16 %v135
    %v922 = vunpack.c.h.b16 %v135
    %v923 = vunpack.c.l.b16 %v136
    %v924 = vunpack.c.h.b16 %v136
    %v925 = vunpack.c.l.b16 %v137
    %v926 = vunpack.c.h.b16 %v137
    %v927 = vunpack.c.l.b16 %v138
    %v928 = vunpack.c.h.b16 %v138
    %v929 = vunpack.c.l.b16 %v139
    %v930 = vunpack.c.h.b16 %v139
    %v931 = vunpack.c.l.b16 %v140
    %v932 = vunpack.c.h.b16 %v140
    %v933 = vunpack.c.l.b16 %v141
    %v934 = vunpack.c.h.b16 %v141
    %v935 = vunpack.c.l.b16 %v142
    %v936 = vunpack.c.h.b16 %v142
    %v937 = vunpack.c.l.b16 %v143
    %v938 = vunpack.c.h.b16 %v143
    %v939 = vunpack.c.l.b16 %v144
    %v940 = vunpack.c.h.b16 %v144
    %v941 = vunpack.c.l.b16 %v145
    %v942 = vunpack.c.h.b16 %v145
    %v943 = vunpack.c.l.b16 %v146
    %v944 = vunpack.c.h.b16 %v146
    %v945 = vunpack.c.l.b16 %v147
    %v946 = vunpack.c.h.b16 %v147
    %v947 = vunpack.c.l.b16 %v148
    %v948 = vunpack.c.h.b16 %v148
    %v949 = vunpack.c.l.b16 %v149
    %v950 = vunpack.c.h.b16 %v149
    %v951 = vunpack.c.l.b16 %v150
    %v952 = vunpack.c.h.b16 %v150
    %v953 = vunpack.c.l.b16 %v151
    %v954 = vunpack.c.h.b16 %v151
    %v955 = vunpack.c.l.b16 %v152
    %v956 = vunpack.c.h.b16 %v152
    %v957 = vunpack.c.l.b16 %v153
    %v958 = vunpack.c.h.b16 %v153
    %v959 = vunpack.c.l.b16 %v154
    %v960 = vunpack.c.h.b16 %v154
    %v961 = vunpack.c.l.b16 %v155
    %v962 = vunpack.c.h.b16 %v155
    %v963 = vunpack.c.l.b16 %v156
    %v964 = vunpack.c.h.b16 %v156
    %v965 = vunpack.c.l.b16 %v157
    %v966 = vunpack.c.h.b16 %v157
    %v967 = vunpack.c.l.b16 %v158
    %v968 = vunpack.c.h.b16 %v158
    %v969 = vunpack.c.l.b16 %v159
    %v970 = vunpack.c.h.b16 %v159
    %v971 = vunpack.c.l.b16 %v160
    %v972 = vunpack.c.h.b16 %v160
    %v973 = vunpack.c.l.b16 %v161
    %v974 = vunpack.c.h.b16 %v161
    %v975 = vunpack.c.l.b16 %v162
    %v976 = vunpack.c.h.b16 %v162
    %v977 = vunpack.c.l.b16 %v163
    %v978 = vunpack.c.h.b16 %v163
    %v979 = vunpack.c.l.b16 %v164
    %v980 = vunpack.c.h.b16 %v164
    %v981 = vunpack.c.l.b16 %v165
    %v982 = vunpack.c.h.b16 %v165
    %v983 = vunpack.c.l.b16 %v166
    %v984 = vunpack.c.h.b16 %v166
    %v985 = vunpack.c.l.b16 %v167
    %v986 = vunpack.c.h.b16 %v167
    %v987 = vunpack.c.l.b16 %v168
    %v988 = vunpack.c.h.b16 %v168
    %v989 = vunpack.c.l.b16 %v169
    %v990 = vunpack.c.h.b16 %v169
    %v991 = vunpack.c.l.b16 %v170
    %v992 = vunpack.c.h.b16 %v170
    %v993 = vunpack.c.l.b16 %v171
    %v994 = vunpack.c.h.b16 %v171
    %v995 = vunpack.c.l.b16 %v172
    %v996 = vunpack.c.h.b16 %v172
    %v997 = vunpack.c.l.b16 %v173
    %v998 = vunpack.c.h.b16 %v173
    %v999 = vunpack.c.l.b16 %v174
    %v1000 = vunpack.c.h.b16 %v174
    %v1001 = vunpack.c.l.b16 %v175
    %v1002 = vunpack.c.h.b16 %v175
    %v1003 = vunpack.c.l.b16 %v176
    %v1004 = vunpack.c.h.b16 %v176
    %v1005 = vunpack.c.l.b16 %v177
    %v1006 = vunpack.c.h.b16 %v177
    %v1007 = vunpack.c.l.b16 %v178
    %v1008 = vunpack.c.h.b16 %v178
    %v1009 = vunpack.c.l.b16 %v179
    %v1010 = vunpack.c.h.b16 %v179
    %v1011 = vunpack.c.l.b16 %v180
    %v1012 = vunpack.c.h.b16 %v180
    %v1013 = vunpack.c.l.b16 %v181
    %v1014 = vunpack.c.h.b16 %v181
    %v1015 = vunpack.c.l.b16 %v182
    %v1016 = vunpack.c.h.b16 %v182
    %v1017 = vunpack.c.l.b16 %v183
    %v1018 = vunpack.c.h.b16 %v183
    %v1019 = vunpack.c.l.b16 %v184
    %v1020 = vunpack.c.h.b16 %v184
    %v1021 = vunpack.c.l.b16 %v185
    %v1022 = vunpack.c.h.b16 %v185
    %v1023 = vunpack.c.l.b16 %v186
    %v1024 = vunpack.c.h.b16 %v186
    %v1025 = vunpack.c.l.b16 %v187
    %v1026 = vunpack.c.h.b16 %v187
    %v1027 = vunpack.c.l.b16 %v188
    %v1028 = vunpack.c.h.b16 %v188
    %v1029 = vunpack.c.l.b16 %v189
    %v1030 = vunpack.c.h.b16 %v189
    %v1031 = vunpack.c.l.b16 %v190
    %v1032 = vunpack.c.h.b16 %v190
    %v1033 = vunpack.c.l.b16 %v191
    %v1034 = vunpack.c.h.b16 %v191
    %v1035 = vunpack.c.l.b16 %v192
    %v1036 = vunpack.c.h.b16 %v192
    %v1037 = vunpack.c.l.b16 %v193
    %v1038 = vunpack.c.h.b16 %v193
    %v1039 = vunpack.c.l.b16 %v194
    %v1040 = vunpack.c.h.b16 %v194
    %v1041 = vunpack.c.l.b16 %v195
    %v1042 = vunpack.c.h.b16 %v195
    %v1043 = vunpack.c.l.b16 %v196
    %v1044 = vunpack.c.h.b16 %v196
    %v1045 = vunpack.c.l.b16 %v197
    %v1046 = vunpack.c.h.b16 %v197
    %v1047 = vunpack.c.l.b16 %v198
    %v1048 = vunpack.c.h.b16 %v198
    %v1049 = vunpack.c.l.b16 %v199
    %v1050 = vunpack.c.h.b16 %v199
    %v1051 = vunpack.c.l.b16 %v200
    %v1052 = vunpack.c.h.b16 %v200
    %v1053 = vunpack.c.l.b16 %v201
    %v1054 = vunpack.c.h.b16 %v201
    %v1055 = vunpack.c.l.b16 %v202
    %v1056 = vunpack.c.h.b16 %v202
    %v1057 = vunpack.c.l.b16 %v203
    %v1058 = vunpack.c.h.b16 %v203
    %v1059 = vunpack.c.l.b16 %v204
    %v1060 = vunpack.c.h.b16 %v204
    %v1061 = vunpack.c.l.b16 %v205
    %v1062 = vunpack.c.h.b16 %v205
    %v1063 = vunpack.c.l.b16 %v206
    %v1064 = vunpack.c.h.b16 %v206
    %v1065 = vunpack.c.l.b16 %v207
    %v1066 = vunpack.c.h.b16 %v207
    %v1067 = vunpack.c.l.b16 %v208
    %v1068 = vunpack.c.h.b16 %v208
    %v1069 = vunpack.c.l.b16 %v209
    %v1070 = vunpack.c.h.b16 %v209
    %v1071 = vunpack.c.l.b16 %v210
    %v1072 = vunpack.c.h.b16 %v210
    %v1073 = vunpack.c.l.b16 %v211
    %v1074 = vunpack.c.h.b16 %v211
    %v1075 = vunpack.c.l.b16 %v212
    %v1076 = vunpack.c.h.b16 %v212
    %v1077 = vunpack.c.l.b16 %v213
    %v1078 = vunpack.c.h.b16 %v213
    %v1079 = vunpack.c.l.b16 %v214
    %v1080 = vunpack.c.h.b16 %v214
    %v1081 = vunpack.c.l.b16 %v215
    %v1082 = vunpack.c.h.b16 %v215
    %v1083 = vunpack.c.l.b16 %v216
    %v1084 = vunpack.c.h.b16 %v216
    %v1085 = vunpack.c.l.b16 %v217
    %v1086 = vunpack.c.h.b16 %v217
    %v1087 = vunpack.c.l.b16 %v218
    %v1088 = vunpack.c.h.b16 %v218
    %v1089 = vunpack.c.l.b16 %v219
    %v1090 = vunpack.c.h.b16 %v219
    %v1091 = vunpack.c.l.b16 %v220
    %v1092 = vunpack.c.h.b16 %v220
    %v1093 = vunpack.c.l.b16 %v221
    %v1094 = vunpack.c.h.b16 %v221
    %v1095 = vunpack.c.l.b16 %v222
    %v1096 = vunpack.c.h.b16 %v222
    %v1097 = vunpack.c.l.b16 %v223
    %v1098 = vunpack.c.h.b16 %v223
    %v1099 = vunpack.c.l.b16 %v224
    %v1100 = vunpack.c.h.b16 %v224
    %v1101 = vunpack.c.l.b16 %v225
    %v1102 = vunpack.c.h.b16 %v225
    %v1103 = vunpack.c.l.b16 %v226
    %v1104 = vunpack.c.h.b16 %v226
    %v1105 = vunpack.c.l.b16 %v227
    %v1106 = vunpack.c.h.b16 %v227
    %v1107 = vunpack.c.l.b16 %v228
    %v1108 = vunpack.c.h.b16 %v228
    %v1109 = vunpack.c.l.b16 %v229
    %v1110 = vunpack.c.h.b16 %v229
    %v1111 = vunpack.c.l.b16 %v230
    %v1112 = vunpack.c.h.b16 %v230
    %v1113 = vunpack.c.l.b16 %v231
    %v1114 = vunpack.c.h.b16 %v231
    %v1115 = vunpack.c.l.b16 %v232
    %v1116 = vunpack.c.h.b16 %v232
    %v1117 = vunpack.c.l.b16 %v233
    %v1118 = vunpack.c.h.b16 %v233
    %v1119 = vunpack.c.l.b16 %v234
    %v1120 = vunpack.c.h.b16 %v234
    %v1121 = vunpack.c.l.b16 %v235
    %v1122 = vunpack.c.h.b16 %v235
    %v1123 = vunpack.c.l.b16 %v236
    %v1124 = vunpack.c.h.b16 %v236
    %v1125 = vunpack.c.l.b16 %v237
    %v1126 = vunpack.c.h.b16 %v237
    %v1127 = vunpack.c.l.b16 %v238
    %v1128 = vunpack.c.h.b16 %v238
    %v1129 = vunpack.c.l.b16 %v239
    %v1130 = vunpack.c.h.b16 %v239
    %v1131 = vunpack.c.l.b16 %v240
    %v1132 = vunpack.c.h.b16 %v240
    %v1133 = vunpack.c.l.b16 %v241
    %v1134 = vunpack.c.h.b16 %v241
    %v1135 = vunpack.c.l.b16 %v242
    %v1136 = vunpack.c.h.b16 %v242
    %v1137 = vunpack.c.l.b16 %v243
    %v1138 = vunpack.c.h.b16 %v243
    %v1139 = vunpack.c.l.b16 %v244
    %v1140 = vunpack.c.h.b16 %v244
    %v1141 = vunpack.c.l.b16 %v245
    %v1142 = vunpack.c.h.b16 %v245
    %v1143 = vunpack.c.l.b16 %v246
    %v1144 = vunpack.c.h.b16 %v246
    %v1145 = vunpack.c.l.b16 %v247
    %v1146 = vunpack.c.h.b16 %v247
    %v1147 = vunpack.c.l.b16 %v248
    %v1148 = vunpack.c.h.b16 %v248
    %v1149 = vunpack.c.l.b16 %v249
    %v1150 = vunpack.c.h.b16 %v249
    %v1151 = vunpack.c.l.b16 %v250
    %v1152 = vunpack.c.h.b16 %v250
    %v1153 = vunpack.c.l.b16 %v251
    %v1154 = vunpack.c.h.b16 %v251
    %v1155 = vunpack.c.l.b16 %v252
    %v1156 = vunpack.c.h.b16 %v252
    %v1157 = vunpack.c.l.b16 %v253
    %v1158 = vunpack.c.h.b16 %v253
    %v1159 = vunpack.c.l.b16 %v254
    %v1160 = vunpack.c.h.b16 %v254
    %v1161 = vunpack.c.l.b16 %v255
    %v1162 = vunpack.c.h.b16 %v255
    %v1163 = vunpack.c.l.b16 %v256
    %v1164 = vunpack.c.h.b16 %v256
    %v1165 = vunpack.c.l.b16 %v257
    %v1166 = vunpack.c.h.b16 %v257
    %v1167 = vunpack.c.l.b16 %v258
    %v1168 = vunpack.c.h.b16 %v258
    %v1169 = vunpack.c.l.b16 %v259
    %v1170 = vunpack.c.h.b16 %v259
    %v1171 = vunpack.c.l.b16 %v260
    %v1172 = vunpack.c.h.b16 %v260
    %v1173 = vunpack.c.l.b16 %v261
    %v1174 = vunpack.c.h.b16 %v261
    %v1175 = vunpack.c.l.b16 %v262
    %v1176 = vunpack.c.h.b16 %v262
    %v1177 = vunpack.c.l.b16 %v263
    %v1178 = vunpack.c.h.b16 %v263
    %v1179 = vunpack.c.l.b16 %v264
    %v1180 = vunpack.c.h.b16 %v264
    %v1181 = vunpack.c.l.b16 %v265
    %v1182 = vunpack.c.h.b16 %v265
    %v1183 = vunpack.c.l.b16 %v266
    %v1184 = vunpack.c.h.b16 %v266
    %v1185 = vunpack.c.l.b16 %v267
    %v1186 = vunpack.c.h.b16 %v267
    %v1187 = vunpack.c.l.b16 %v268
    %v1188 = vunpack.c.h.b16 %v268
    %v1189 = vunpack.c.l.b16 %v269
    %v1190 = vunpack.c.h.b16 %v269
    %v1191 = vunpack.c.l.b16 %v270
    %v1192 = vunpack.c.h.b16 %v270
    %v1193 = vunpack.c.l.b16 %v271
    %v1194 = vunpack.c.h.b16 %v271
    %v1195 = vunpack.c.l.b16 %v272
    %v1196 = vunpack.c.h.b16 %v272
    %v1197 = vunpack.c.l.b16 %v273
    %v1198 = vunpack.c.h.b16 %v273
    %v1199 = vunpack.c.l.b16 %v274
    %v1200 = vunpack.c.h.b16 %v274
    %v1201 = vunpack.c.l.b16 %v275
    %v1202 = vunpack.c.h.b16 %v275
    %v1203 = vunpack.c.l.b16 %v276
    %v1204 = vunpack.c.h.b16 %v276
    %v1205 = vunpack.c.l.b16 %v277
    %v1206 = vunpack.c.h.b16 %v277
    %v1207 = vunpack.c.l.b16 %v278
    %v1208 = vunpack.c.h.b16 %v278
    %v1209 = vunpack.c.l.b16 %v279
    %v1210 = vunpack.c.h.b16 %v279
    %v1211 = vunpack.c.l.b16 %v280
    %v1212 = vunpack.c.h.b16 %v280
    %v1213 = vunpack.c.l.b16 %v281
    %v1214 = vunpack.c.h.b16 %v281
    %v1215 = vunpack.c.l.b16 %v282
    %v1216 = vunpack.c.h.b16 %v282
    %v1217 = vunpack.c.l.b16 %v283
    %v1218 = vunpack.c.h.b16 %v283
    %v1219 = vunpack.c.l.b16 %v284
    %v1220 = vunpack.c.h.b16 %v284
    %v1221 = vunpack.c.l.b16 %v285
    %v1222 = vunpack.c.h.b16 %v285
    %v1223 = vunpack.c.l.b16 %v286
    %v1224 = vunpack.c.h.b16 %v286
    %v1225 = vunpack.c.l.b16 %v287
    %v1226 = vunpack.c.h.b16 %v287
    %v1227 = vunpack.c.l.b16 %v288
    %v1228 = vunpack.c.h.b16 %v288
    %v1229 = vunpack.c.l.b16 %v289
    %v1230 = vunpack.c.h.b16 %v289
    %v1231 = vunpack.c.l.b16 %v290
    %v1232 = vunpack.c.h.b16 %v290
    %v1233 = vunpack.c.l.b16 %v291
    %v1234 = vunpack.c.h.b16 %v291
    %v1235 = vunpack.c.l.b16 %v292
    %v1236 = vunpack.c.h.b16 %v292
    %v1237 = vunpack.c.l.b16 %v293
    %v1238 = vunpack.c.h.b16 %v293
    %v1239 = vunpack.c.l.b16 %v294
    %v1240 = vunpack.c.h.b16 %v294
    %v1241 = vunpack.c.l.b16 %v295
    %v1242 = vunpack.c.h.b16 %v295
    %v1243 = vunpack.c.l.b16 %v296
    %v1244 = vunpack.c.h.b16 %v296
    %v1245 = vunpack.c.l.b16 %v297
    %v1246 = vunpack.c.h.b16 %v297
    %v1247 = vunpack.c.l.b16 %v298
    %v1248 = vunpack.c.h.b16 %v298
    %v1249 = vunpack.c.l.b16 %v299
    %v1250 = vunpack.c.h.b16 %v299
    %v1251 = vunpack.c.l.b16 %v300
    %v1252 = vunpack.c.h.b16 %v300
    %v1253 = vunpack.c.l.b16 %v301
    %v1254 = vunpack.c.h.b16 %v301
    %v1255 = vunpack.c.l.b16 %v302
    %v1256 = vunpack.c.h.b16 %v302
    %v1257 = vunpack.c.l.b16 %v303
    %v1258 = vunpack.c.h.b16 %v303
    %v1259 = vunpack.c.l.b16 %v304
    %v1260 = vunpack.c.h.b16 %v304
    %v1261 = vunpack.c.l.b16 %v305
    %v1262 = vunpack.c.h.b16 %v305
    %v1263 = vunpack.c.l.b16 %v306
    %v1264 = vunpack.c.h.b16 %v306
    %v1265 = vunpack.c.l.b16 %v307
    %v1266 = vunpack.c.h.b16 %v307
    %v1267 = vunpack.c.l.b16 %v308
    %v1268 = vunpack.c.h.b16 %v308
    %v1269 = vunpack.c.l.b16 %v309
    %v1270 = vunpack.c.h.b16 %v309
    %v1271 = vunpack.c.l.b16 %v310
    %v1272 = vunpack.c.h.b16 %v310
    %v1273 = vunpack.c.l.b16 %v311
    %v1274 = vunpack.c.h.b16 %v311
    %v1275 = vunpack.c.l.b16 %v312
    %v1276 = vunpack.c.h.b16 %v312
    %v1277 = vunpack.c.l.b16 %v313
    %v1278 = vunpack.c.h.b16 %v313
    %v1279 = vunpack.c.l.b16 %v314
    %v1280 = vunpack.c.h.b16 %v314
    %v1281 = vunpack.c.l.b16 %v315
    %v1282 = vunpack.c.h.b16 %v315
    %v1283 = vunpack.c.l.b16 %v316
    %v1284 = vunpack.c.h.b16 %v316
    %v1285 = vunpack.c.l.b16 %v317
    %v1286 = vunpack.c.h.b16 %v317
    %v1287 = vunpack.c.l.b16 %v318
    %v1288 = vunpack.c.h.b16 %v318
    %v1289 = vunpack.c.l.b16 %v319
    %v1290 = vunpack.c.h.b16 %v319
    %v1291 = vunpack.c.l.b16 %v320
    %v1292 = vunpack.c.h.b16 %v320
    %v1293 = vunpack.c.l.b16 %v321
    %v1294 = vunpack.c.h.b16 %v321
    %v1295 = vunpack.c.l.b16 %v322
    %v1296 = vunpack.c.h.b16 %v322
    %v1297 = vunpack.c.l.b16 %v323
    %v1298 = vunpack.c.h.b16 %v323
    %v1299 = vunpack.c.l.b16 %v324
    %v1300 = vunpack.c.h.b16 %v324
    %v1301 = vunpack.c.l.b16 %v325
    %v1302 = vunpack.c.h.b16 %v325
    %v1303 = vunpack.c.l.b16 %v326
    %v1304 = vunpack.c.h.b16 %v326
    %v1305 = vunpack.c.l.b16 %v327
    %v1306 = vunpack.c.h.b16 %v327
    %v1307 = vunpack.c.l.b16 %v328
    %v1308 = vunpack.c.h.b16 %v328
    %v1309 = vunpack.c.l.b16 %v329
    %v1310 = vunpack.c.h.b16 %v329
    %v1311 = vunpack.c.l.b16 %v330
    %v1312 = vunpack.c.h.b16 %v330
    %v1313 = vunpack.c.l.b16 %v331
    %v1314 = vunpack.c.h.b16 %v331
    %v1315 = vunpack.c.l.b16 %v332
    %v1316 = vunpack.c.h.b16 %v332
    %v1317 = vunpack.c.l.b16 %v333
    %v1318 = vunpack.c.h.b16 %v333
    %v1319 = vunpack.c.l.b16 %v334
    %v1320 = vunpack.c.h.b16 %v334
    %v1321 = vunpack.c.l.b16 %v335
    %v1322 = vunpack.c.h.b16 %v335
    %v1323 = vunpack.c.l.b16 %v336
    %v1324 = vunpack.c.h.b16 %v336
    %v1325 = vunpack.c.l.b16 %v337
    %v1326 = vunpack.c.h.b16 %v337
    %v1327 = vunpack.c.l.b16 %v338
    %v1328 = vunpack.c.h.b16 %v338
    %v1329 = vunpack.c.l.b16 %v339
    %v1330 = vunpack.c.h.b16 %v339
    %v1331 = vunpack.c.l.b16 %v340
    %v1332 = vunpack.c.h.b16 %v340
    %v1333 = vunpack.c.l.b16 %v341
    %v1334 = vunpack.c.h.b16 %v341
    %v1335 = vunpack.c.l.b16 %v342
    %v1336 = vunpack.c.h.b16 %v342
    %v1337 = vunpack.c.l.b16 %v343
    %v1338 = vunpack.c.h.b16 %v343
    %v1339 = vunpack.c.l.b16 %v344
    %v1340 = vunpack.c.h.b16 %v344
    %v1341 = vunpack.c.l.b16 %v345
    %v1342 = vunpack.c.h.b16 %v345
    %v1343 = vunpack.c.l.b16 %v346
    %v1344 = vunpack.c.h.b16 %v346
    %v1345 = vunpack.c.l.b16 %v347
    %v1346 = vunpack.c.h.b16 %v347
    %v1347 = vunpack.c.l.b16 %v348
    %v1348 = vunpack.c.h.b16 %v348
    %v1349 = vunpack.c.l.b16 %v349
    %v1350 = vunpack.c.h.b16 %v349
    %v1351 = vunpack.c.l.b16 %v350
    %v1352 = vunpack.c.h.b16 %v350
    %v1353 = vunpack.c.l.b16 %v351
    %v1354 = vunpack.c.h.b16 %v351
    %v1355 = vunpack.c.l.b16 %v352
    %v1356 = vunpack.c.h.b16 %v352
    %v1357 = vunpack.c.l.b16 %v353
    %v1358 = vunpack.c.h.b16 %v353
    %v1359 = vunpack.c.l.b16 %v354
    %v1360 = vunpack.c.h.b16 %v354
    %v1361 = vunpack.c.l.b16 %v355
    %v1362 = vunpack.c.h.b16 %v355
    %v1363 = vunpack.c.l.b16 %v356
    %v1364 = vunpack.c.h.b16 %v356
    %v1365 = vunpack.c.l.b16 %v357
    %v1366 = vunpack.c.h.b16 %v357
    %v1367 = vunpack.c.l.b16 %v358
    %v1368 = vunpack.c.h.b16 %v358
    %v1369 = vunpack.c.l.b16 %v359
    %v1370 = vunpack.c.h.b16 %v359
    %v1371 = vunpack.c.l.b16 %v360
    %v1372 = vunpack.c.h.b16 %v360
    %v1373 = vunpack.c.l.b16 %v361
    %v1374 = vunpack.c.h.b16 %v361
    %v1375 = vunpack.c.l.b16 %v362
    %v1376 = vunpack.c.h.b16 %v362
    %v1377 = vunpack.c.l.b16 %v363
    %v1378 = vunpack.c.h.b16 %v363
    %v1379 = vunpack.c.l.b16 %v364
    %v1380 = vunpack.c.h.b16 %v364
    %v1381 = vunpack.c.l.b16 %v365
    %v1382 = vunpack.c.h.b16 %v365
    %v1383 = vunpack.c.l.b16 %v366
    %v1384 = vunpack.c.h.b16 %v366
    %v1385 = vunpack.c.l.b16 %v367
    %v1386 = vunpack.c.h.b16 %v367
    %v1387 = vunpack.c.l.b16 %v368
    %v1388 = vunpack.c.h.b16 %v368
    %v1389 = vunpack.c.l.b16 %v369
    %v1390 = vunpack.c.h.b16 %v369
    %v1391 = vunpack.c.l.b16 %v370
    %v1392 = vunpack.c.h.b16 %v370
    %v1393 = vunpack.c.l.b16 %v371
    %v1394 = vunpack.c.h.b16 %v371
    %v1395 = vunpack.c.l.b16 %v372
    %v1396 = vunpack.c.h.b16 %v372
    %v1397 = vunpack.c.l.b16 %v373
    %v1398 = vunpack.c.h.b16 %v373
    %v1399 = vunpack.c.l.b16 %v374
    %v1400 = vunpack.c.h.b16 %v374
    %v1401 = vunpack.c.l.b16 %v375
    %v1402 = vunpack.c.h.b16 %v375
    %v1403 = vunpack.c.l.b16 %v376
    %v1404 = vunpack.c.h.b16 %v376
    %v1405 = vunpack.c.l.b16 %v377
    %v1406 = vunpack.c.h.b16 %v377
    %v1407 = vunpack.c.l.b16 %v378
    %v1408 = vunpack.c.h.b16 %v378
    %v1409 = vunpack.c.l.b16 %v379
    %v1410 = vunpack.c.h.b16 %v379
    %v1411 = vunpack.c.l.b16 %v380
    %v1412 = vunpack.c.h.b16 %v380
    %v1413 = vunpack.c.l.b16 %v381
    %v1414 = vunpack.c.h.b16 %v381
    %v1415 = vunpack.c.l.b16 %v382
    %v1416 = vunpack.c.h.b16 %v382
    %v1417 = vunpack.c.l.b16 %v383
    %v1418 = vunpack.c.h.b16 %v383
    %v1419 = vunpack.c.l.b16 %v384
    %v1420 = vunpack.c.h.b16 %v384
    %v1421 = vunpack.c.l.b16 %v385
    %v1422 = vunpack.c.h.b16 %v385
    %v1423 = vunpack.c.l.b16 %v386
    %v1424 = vunpack.c.h.b16 %v386
    %v1425 = vunpack.c.l.b16 %v387
    %v1426 = vunpack.c.h.b16 %v387
    %v1427 = vunpack.c.l.b16 %v388
    %v1428 = vunpack.c.h.b16 %v388
    %v1429 = vunpack.c.l.b16 %v389
    %v1430 = vunpack.c.h.b16 %v389
    %v1431 = vunpack.c.l.b16 %v390
    %v1432 = vunpack.c.h.b16 %v390
    %v1433 = vunpack.c.l.b16 %v391
    %v1434 = vunpack.c.h.b16 %v391
    %v1435 = vunpack.c.l.b16 %v392
    %v1436 = vunpack.c.h.b16 %v392
    %v1437 = vunpack.c.l.b16 %v393
    %v1438 = vunpack.c.h.b16 %v393
    %v1439 = vunpack.c.l.b16 %v394
    %v1440 = vunpack.c.h.b16 %v394
    %v1441 = vunpack.c.l.b16 %v395
    %v1442 = vunpack.c.h.b16 %v395
    %v1443 = vunpack.c.l.b16 %v396
    %v1444 = vunpack.c.h.b16 %v396
    %v1445 = vunpack.c.l.b16 %v397
    %v1446 = vunpack.c.h.b16 %v397
    %v1447 = vpack.c.b16 %v877, %v871
    %v1448 = vpack.c.b16 %v878, %v872
    %v1449 = vpack.c.b16 %v879, %v873
    %v1450 = vpack.c.b16 %v880, %v874
    %v1451 = vpack.c.b16 %v881, %v875
    %v1452 = vpack.c.b16 %v882, %v876
    %v1453 = vpack.c.b16 %v889, %v883
    %v1454 = vpack.c.b16 %v890, %v884
    %v1455 = vpack.c.b16 %v891, %v885
    %v1456 = vpack.c.b16 %v892, %v886
    %v1457 = vpack.c.b16 %v893, %v887
    %v1458 = vpack.c.b16 %v894, %v888
    %v1459 = vpack.c.b16 %v901, %v895
    %v1460 = vpack.c.b16 %v902, %v896
    %v1461 = vpack.c.b16 %v903, %v897
    %v1462 = vpack.c.b16 %v904, %v898
    %v1463 = vpack.c.b16 %v905, %v899
    %v1464 = vpack.c.b16 %v906, %v900
    %v1465 = vpack.c.b16 %v913, %v907
    %v1466 = vpack.c.b16 %v914, %v908
    %v1467 = vpack.c.b16 %v915, %v909
    %v1468 = vpack.c.b16 %v916, %v910
    %v1469 = vpack.c.b16 %v917, %v911
    %v1470 = vpack.c.b16 %v918, %v912
    %v1471 = vpack.c.b16 %v925, %v919
    %v1472 = vpack.c.b16 %v926, %v920
    %v1473 = vpack.c.b16 %v927, %v921
    %v1474 = vpack.c.b16 %v928, %v922
    %v1475 = vpack.c.b16 %v929, %v923
    %v1476 = vpack.c.b16 %v930, %v924
    %v1477 = vpack.c.b16 %v937, %v931
    %v1478 = vpack.c.b16 %v938, %v932
    %v1479 = vpack.c.b16 %v939, %v933
    %v1480 = vpack.c.b16 %v940, %v934
    %v1481 = vpack.c.b16 %v941, %v935
    %v1482 = vpack.c.b16 %v942, %v936
    %v1483 = vpack.c.b16 %v949, %v943
    %v1484 = vpack.c.b16 %v950, %v944
    %v1485 = vpack.c.b16 %v951, %v945
    %v1486 = vpack.c.b16 %v952, %v946
    %v1487 = vpack.c.b16 %v953, %v947
    %v1488 = vpack.c.b16 %v954, %v948
    %v1489 = vpack.c.b16 %v961, %v955
    %v1490 = vpack.c.b16 %v962, %v956
    %v1491 = vpack.c.b16 %v963, %v957
    %v1492 = vpack.c.b16 %v964, %v958
    %v1493 = vpack.c.b16 %v965, %v959
    %v1494 = vpack.c.b16 %v966, %v960
    %v1495 = vpack.c.b16 %v973, %v967
    %v1496 = vpack.c.b16 %v974, %v968
    %v1497 = vpack.c.b16 %v975, %v969
    %v1498 = vpack.c.b16 %v976, %v970
    %v1499 = vpack.c.b16 %v977, %v971
    %v1500 = vpack.c.b16 %v978, %v972
    %v1501 = vpack.c.b16 %v985, %v979
    %v1502 = vpack.c.b16 %v986, %v980
    %v1503 = vpack.c.b16 %v987, %v981
    %v1504 = vpack.c.b16 %v988, %v982
    %v1505 = vpack.c.b16 %v989, %v983
    %v1506 = vpack.c.b16 %v990, %v984
    %v1507 = vpack.c.b16 %v997, %v991
    %v1508 = vpack.c.b16 %v998, %v992
    %v1509 = vpack.c.b16 %v999, %v993
    %v1510 = vpack.c.b16 %v1000, %v994
    %v1511 = vpack.c.b16 %v1001, %v995
    %v1512 = vpack.c.b16 %v1002, %v996
    %v1513 = vpack.c.b16 %v1009, %v1003
    %v1514 = vpack.c.b16 %v1010, %v1004
    %v1515 = vpack.c.b16 %v1011, %v1005
    %v1516 = vpack.c.b16 %v1012, %v1006
    %v1517 = vpack.c.b16 %v1013, %v1007
    %v1518 = vpack.c.b16 %v1014, %v1008
    %v1519 = vpack.c.b16 %v1021, %v1015
    %v1520 = vpack.c.b16 %v1022, %v1016
    %v1521 = vpack.c.b16 %v1023, %v1017
    %v1522 = vpack.c.b16 %v1024, %v1018
    %v1523 = vpack.c.b16 %v1025, %v1019
    %v1524 = vpack.c.b16 %v1026, %v1020
    %v1525 = vpack.c.b16 %v1033, %v1027
    %v1526 = vpack.c.b16 %v1034, %v1028
    %v1527 = vpack.c.b16 %v1035, %v1029
    %v1528 = vpack.c.b16 %v1036, %v1030
    %v1529 = vpack.c.b16 %v1037, %v1031
    %v1530 = vpack.c.b16 %v1038, %v1032
    %v1531 = vpack.c.b16 %v1045, %v1039
    %v1532 = vpack.c.b16 %v1046, %v1040
    %v1533 = vpack.c.b16 %v1047, %v1041
    %v1534 = vpack.c.b16 %v1048, %v1042
    %v1535 = vpack.c.b16 %v1049, %v1043
    %v1536 = vpack.c.b16 %v1050, %v1044
    %v1537 = vpack.c.b16 %v1057, %v1051
    %v1538 = vpack.c.b16 %v1058, %v1052
    %v1539 = vpack.c.b16 %v1059, %v1053
    %v1540 = vpack.c.b16 %v1060, %v1054
    %v1541 = vpack.c.b16 %v1061, %v1055
    %v1542 = vpack.c.b16 %v1062, %v1056
    %v1543 = vpack.c.b16 %v1069, %v1063
    %v1544 = vpack.c.b16 %v1070, %v1064
    %v1545 = vpack.c.b16 %v1071, %v1065
    %v1546 = vpack.c.b16 %v1072, %v1066
    %v1547 = vpack.c.b16 %v1073, %v1067
    %v1548 = vpack.c.b16 %v1074, %v1068
    %v1549 = vpack.c.b16 %v1081, %v1075
    %v1550 = vpack.c.b16 %v1082, %v1076
    %v1551 = vpack.c.b16 %v1083, %v1077
    %v1552 = vpack.c.b16 %v1084, %v1078
    %v1553 = vpack.c.b16 %v1085, %v1079
    %v1554 = vpack.c.b16 %v1086, %v1080
    %v1555 = vpack.c.b16 %v1093, %v1087
    %v1556 = vpack.c.b16 %v1094, %v1088
    %v1557 = vpack.c.b16 %v1095, %v1089
    %v1558 = vpack.c.b16 %v1096, %v1090
    %v1559 = vpack.c.b16 %v1097, %v1091
    %v1560 = vpack.c.b16 %v1098, %v1092
    %v1561 = vpack.c.b16 %v1105, %v1099
    %v1562 = vpack.c.b16 %v1106, %v1100
    %v1563 = vpack.c.b16 %v1107, %v1101
    %v1564 = vpack.c.b16 %v1108, %v1102
    %v1565 = vpack.c.b16 %v1109, %v1103
    %v1566 = vpack.c.b16 %v1110, %v1104
    %v1567 = vpack.c.b16 %v1117, %v1111
    %v1568 = vpack.c.b16 %v1118, %v1112
    %v1569 = vpack.c.b16 %v1119, %v1113
    %v1570 = vpack.c.b16 %v1120, %v1114
    %v1571 = vpack.c.b16 %v1121, %v1115
    %v1572 = vpack.c.b16 %v1122, %v1116
    %v1573 = vpack.c.b16 %v1129, %v1123
    %v1574 = vpack.c.b16 %v1130, %v1124
    %v1575 = vpack.c.b16 %v1131, %v1125
    %v1576 = vpack.c.b16 %v1132, %v1126
    %v1577 = vpack.c.b16 %v1133, %v1127
    %v1578 = vpack.c.b16 %v1134, %v1128
    %v1579 = vpack.c.b16 %v1141, %v1135
    %v1580 = vpack.c.b16 %v1142, %v1136
    %v1581 = vpack.c.b16 %v1143, %v1137
    %v1582 = vpack.c.b16 %v1144, %v1138
    %v1583 = vpack.c.b16 %v1145, %v1139
    %v1584 = vpack.c.b16 %v1146, %v1140
    %v1585 = vpack.c.b16 %v1153, %v1147
    %v1586 = vpack.c.b16 %v1154, %v1148
    %v1587 = vpack.c.b16 %v1155, %v1149
    %v1588 = vpack.c.b16 %v1156, %v1150
    %v1589 = vpack.c.b16 %v1157, %v1151
    %v1590 = vpack.c.b16 %v1158, %v1152
    %v1591 = vpack.c.b16 %v1165, %v1159
    %v1592 = vpack.c.b16 %v1166, %v1160
    %v1593 = vpack.c.b16 %v1167, %v1161
    %v1594 = vpack.c.b16 %v1168, %v1162
    %v1595 = vpack.c.b16 %v1169, %v1163
    %v1596 = vpack.c.b16 %v1170, %v1164
    %v1597 = vpack.c.b16 %v1177, %v1171
    %v1598 = vpack.c.b16 %v1178, %v1172
    %v1599 = vpack.c.b16 %v1179, %v1173
    %v1600 = vpack.c.b16 %v1180, %v1174
    %v1601 = vpack.c.b16 %v1181, %v1175
    %v1602 = vpack.c.b16 %v1182, %v1176
    %v1603 = vpack.c.b16 %v1189, %v1183
    %v1604 = vpack.c.b16 %v1190, %v1184
    %v1605 = vpack.c.b16 %v1191, %v1185
    %v1606 = vpack.c.b16 %v1192, %v1186
    %v1607 = vpack.c.b16 %v1193, %v1187
    %v1608 = vpack.c.b16 %v1194, %v1188
    %v1609 = vpack.c.b16 %v1201, %v1195
    %v1610 = vpack.c.b16 %v1202, %v1196
    %v1611 = vpack.c.b16 %v1203, %v1197
    %v1612 = vpack.c.b16 %v1204, %v1198
    %v1613 = vpack.c.b16 %v1205, %v1199
    %v1614 = vpack.c.b16 %v1206, %v1200
    %v1615 = vpack.c.b16 %v1213, %v1207
    %v1616 = vpack.c.b16 %v1214, %v1208
    %v1617 = vpack.c.b16 %v1215, %v1209
    %v1618 = vpack.c.b16 %v1216, %v1210
    %v1619 = vpack.c.b16 %v1217, %v1211
    %v1620 = vpack.c.b16 %v1218, %v1212
    %v1621 = vpack.c.b16 %v1225, %v1219
    %v1622 = vpack.c.b16 %v1226, %v1220
    %v1623 = vpack.c.b16 %v1227, %v1221
    %v1624 = vpack.c.b16 %v1228, %v1222
    %v1625 = vpack.c.b16 %v1229, %v1223
    %v1626 = vpack.c.b16 %v1230, %v1224
    %v1627 = vpack.c.b16 %v1237, %v1231
    %v1628 = vpack.c.b16 %v1238, %v1232
    %v1629 = vpack.c.b16 %v1239, %v1233
    %v1630 = vpack.c.b16 %v1240, %v1234
    %v1631 = vpack.c.b16 %v1241, %v1235
    %v1632 = vpack.c.b16 %v1242, %v1236
    %v1633 = vpack.c.b16 %v1249, %v1243
    %v1634 = vpack.c.b16 %v1250, %v1244
    %v1635 = vpack.c.b16 %v1251, %v1245
    %v1636 = vpack.c.b16 %v1252, %v1246
    %v1637 = vpack.c.b16 %v1253, %v1247
    %v1638 = vpack.c.b16 %v1254, %v1248
    %v1639 = vpack.c.b16 %v1261, %v1255
    %v1640 = vpack.c.b16 %v1262, %v1256
    %v1641 = vpack.c.b16 %v1263, %v1257
    %v1642 = vpack.c.b16 %v1264, %v1258
    %v1643 = vpack.c.b16 %v1265, %v1259
    %v1644 = vpack.c.b16 %v1266, %v1260
    %v1645 = vpack.c.b16 %v1273, %v1267
    %v1646 = vpack.c.b16 %v1274, %v1268
    %v1647 = vpack.c.b16 %v1275, %v1269
    %v1648 = vpack.c.b16 %v1276, %v1270
    %v1649 = vpack.c.b16 %v1277, %v1271
    %v1650 = vpack.c.b16 %v1278, %v1272
    %v1651 = vpack.c.b16 %v1285, %v1279
    %v1652 = vpack.c.b16 %v1286, %v1280
    %v1653 = vpack.c.b16 %v1287, %v1281
    %v1654 = vpack.c.b16 %v1288, %v1282
    %v1655 = vpack.c.b16 %v1289, %v1283
    %v1656 = vpack.c.b16 %v1290, %v1284
    %v1657 = vpack.c.b16 %v1297, %v1291
    %v1658 = vpack.c.b16 %v1298, %v1292
    %v1659 = vpack.c.b16 %v1299, %v1293
    %v1660 = vpack.c.b16 %v1300, %v1294
    %v1661 = vpack.c.b16 %v1301, %v1295
    %v1662 = vpack.c.b16 %v1302, %v1296
    %v1663 = vpack.c.b16 %v1309, %v1303
    %v1664 = vpack.c.b16 %v1310, %v1304
    %v1665 = vpack.c.b16 %v1311, %v1305
    %v1666 = vpack.c.b16 %v1312, %v1306
    %v1667 = vpack.c.b16 %v1313, %v1307
    %v1668 = vpack.c.b16 %v1314, %v1308
    %v1669 = vpack.c.b16 %v1321, %v1315
    %v1670 = vpack.c.b16 %v1322, %v1316
    %v1671 = vpack.c.b16 %v1323, %v1317
    %v1672 = vpack.c.b16 %v1324, %v1318
    %v1673 = vpack.c.b16 %v1325, %v1319
    %v1674 = vpack.c.b16 %v1326, %v1320
    %v1675 = vpack.c.b16 %v1333, %v1327
    %v1676 = vpack.c.b16 %v1334, %v1328
    %v1677 = vpack.c.b16 %v1335, %v1329
    %v1678 = vpack.c.b16 %v1336, %v1330
    %v1679 = vpack.c.b16 %v1337, %v1331
    %v1680 = vpack.c.b16 %v1338, %v1332
    %v1681 = vpack.c.b16 %v1345, %v1339
    %v1682 = vpack.c.b16 %v1346, %v1340
    %v1683 = vpack.c.b16 %v1347, %v1341
    %v1684 = vpack.c.b16 %v1348, %v1342
    %v1685 = vpack.c.b16 %v1349, %v1343
    %v1686 = vpack.c.b16 %v1350, %v1344
    %v1687 = vpack.c.b16 %v1357, %v1351
    %v1688 = vpack.c.b16 %v1358, %v1352
    %v1689 = vpack.c.b16 %v1359, %v1353
    %v1690 = vpack.c.b16 %v1360, %v1354
    %v1691 = vpack.c.b16 %v1361, %v1355
    %v1692 = vpack.c.b16 %v1362, %v1356
    %v1693 = vpack.c.b16 %v1369, %v1363
    %v1694 = vpack.c.b16 %v1370, %v1364
    %v1695 = vpack.c.b16 %v1371, %v1365
    %v1696 = vpack.c.b16 %v1372, %v1366
    %v1697 = vpack.c.b16 %v1373, %v1367
    %v1698 = vpack.c.b16 %v1374, %v1368
    %v1699 = vpack.c.b16 %v1381, %v1375
    %v1700 = vpack.c.b16 %v1382, %v1376
    %v1701 = vpack.c.b16 %v1383, %v1377
    %v1702 = vpack.c.b16 %v1384, %v1378
    %v1703 = vpack.c.b16 %v1385, %v1379
    %v1704 = vpack.c.b16 %v1386, %v1380
    %v1705 = vpack.c.b16 %v1393, %v1387
    %v1706 = vpack.c.b16 %v1394, %v1388
    %v1707 = vpack.c.b16 %v1395, %v1389
    %v1708 = vpack.c.b16 %v1396, %v1390
    %v1709 = vpack.c.b16 %v1397, %v1391
    %v1710 = vpack.c.b16 %v1398, %v1392
    %v1711 = vpack.c.b16 %v1405, %v1399
    %v1712 = vpack.c.b16 %v1406, %v1400
    %v1713 = vpack.c.b16 %v1407, %v1401
    %v1714 = vpack.c.b16 %v1408, %v1402
    %v1715 = vpack.c.b16 %v1409, %v1403
    %v1716 = vpack.c.b16 %v1410, %v1404
    %v1717 = vpack.c.b16 %v1417, %v1411
    %v1718 = vpack.c.b16 %v1418, %v1412
    %v1719 = vpack.c.b16 %v1419, %v1413
    %v1720 = vpack.c.b16 %v1420, %v1414
    %v1721 = vpack.c.b16 %v1421, %v1415
    %v1722 = vpack.c.b16 %v1422, %v1416
    %v1723 = vpack.c.b16 %v1429, %v1423
    %v1724 = vpack.c.b16 %v1430, %v1424
    %v1725 = vpack.c.b16 %v1431, %v1425
    %v1726 = vpack.c.b16 %v1432, %v1426
    %v1727 = vpack.c.b16 %v1433, %v1427
    %v1728 = vpack.c.b16 %v1434, %v1428
    %v1729 = vpack.c.b16 %v1441, %v1435
    %v1730 = vpack.c.b16 %v1442, %v1436
    %v1731 = vpack.c.b16 %v1443, %v1437
    %v1732 = vpack.c.b16 %v1444, %v1438
    %v1733 = vpack.c.b16 %v1445, %v1439
    %v1734 = vpack.c.b16 %v1446, %v1440
    %2023 = vmatprep.subr.bf16.mxu0 %v1490
    %2024 = vmatpush1.bf16.msra.mxu0 %v1489
    %2025 = vmatprep.subr.bf16.mxu0 %v1484
    %2026 = vmatpush1.bf16.msra.mxu0 %v1483
    %2027 = vmatprep.subr.bf16.mxu0 %v1478
    %2028 = vmatpush1.bf16.msra.mxu0 %v1477
    %2029 = vmatprep.subr.bf16.mxu0 %v1472
    %2030 = vmatpush1.bf16.msra.mxu0 %v1471
    %2031 = vmatprep.subr.bf16.mxu0 %v1466
    %2032 = vmatpush1.bf16.msra.mxu0 %v1465
    %2033 = vmatprep.subr.bf16.mxu0 %v1460
    %2034 = vmatpush1.bf16.msra.mxu0 %v1459
    %2035 = vmatprep.subr.bf16.mxu0 %v1454
    %2036 = vmatpush1.bf16.msra.mxu0 %v1453
    %2037 = vmatprep.subr.bf16.mxu0 %v1448
    %2038 = vmatpush1.bf16.msra.mxu0 %v1447
    %2039 = vmatprep.subr.bf16.mxu0 %v1538
    %2040 = vmatpush2.bf16.msra.mxu0 %v1537
    %2041 = vmatprep.subr.bf16.mxu0 %v1532
    %2042 = vmatpush2.bf16.msra.mxu0 %v1531
    %2043 = vmatprep.subr.bf16.mxu0 %v1526
    %2044 = vmatpush2.bf16.msra.mxu0 %v1525
    %2045 = vmatprep.subr.bf16.mxu0 %v1520
    %2046 = vmatpush2.bf16.msra.mxu0 %v1519
    %2047 = vmatprep.subr.bf16.mxu0 %v1514
    %2048 = vmatpush2.bf16.msra.mxu0 %v1513
    %2049 = vmatprep.subr.bf16.mxu0 %v1508
    %2050 = vmatpush2.bf16.msra.mxu0 %v1507
    %2051 = vmatprep.subr.bf16.mxu0 %v1502
    %2052 = vmatpush2.bf16.msra.mxu0 %v1501
    %2053 = vmatprep.subr.bf16.mxu0 %v1496
    %2054 = vmatpush2.bf16.msra.mxu0 %v1495
    %2055 = vmatprep.mubr.bf16.mxu0 %v572
    %2056 = vmatmul.mubr.bf16.gmra.mxu0 %v571
    %v2057 = vpop.f32.mrf.mxu0
    %v2058 = vadd.f32 %v474, %v2057
    %v2059 = vpop.f32.mrf.mxu0
    %v2060 = vadd.f32 %v476, %v2059
    %v2061 = vpop.f32.mrf.mxu0
    %v2062 = vpop.f32.mrf.mxu0
    %2063 = vdwg.mxu0
    %2064 = vmatprep.subr.bf16.mxu0 %v1586
    %2065 = vmatpush1.bf16.msra.mxu0 %v1585
    %2066 = vmatprep.subr.bf16.mxu0 %v1580
    %2067 = vmatpush1.bf16.msra.mxu0 %v1579
    %2068 = vmatprep.subr.bf16.mxu0 %v1574
    %2069 = vmatpush1.bf16.msra.mxu0 %v1573
    %2070 = vmatprep.subr.bf16.mxu0 %v1568
    %2071 = vmatpush1.bf16.msra.mxu0 %v1567
    %2072 = vmatprep.subr.bf16.mxu0 %v1562
    %2073 = vmatpush1.bf16.msra.mxu0 %v1561
    %2074 = vmatprep.subr.bf16.mxu0 %v1556
    %2075 = vmatpush1.bf16.msra.mxu0 %v1555
    %2076 = vmatprep.subr.bf16.mxu0 %v1550
    %2077 = vmatpush1.bf16.msra.mxu0 %v1549
    %2078 = vmatprep.subr.bf16.mxu0 %v1544
    %2079 = vmatpush1.bf16.msra.mxu0 %v1543
    %2080 = vmatprep.subr.bf16.mxu0 %v1634
    %2081 = vmatpush2.bf16.msra.mxu0 %v1633
    %2082 = vmatprep.subr.bf16.mxu0 %v1628
    %2083 = vmatpush2.bf16.msra.mxu0 %v1627
    %2084 = vmatprep.subr.bf16.mxu0 %v1622
    %2085 = vmatpush2.bf16.msra.mxu0 %v1621
    %2086 = vmatprep.subr.bf16.mxu0 %v1616
    %2087 = vmatpush2.bf16.msra.mxu0 %v1615
    %2088 = vmatprep.subr.bf16.mxu0 %v1610
    %2089 = vmatpush2.bf16.msra.mxu0 %v1609
    %2090 = vmatprep.subr.bf16.mxu0 %v1604
    %2091 = vmatpush2.bf16.msra.mxu0 %v1603
    %2092 = vmatprep.subr.bf16.mxu0 %v1598
    %2093 = vmatpush2.bf16.msra.mxu0 %v1597
    %2094 = vmatprep.subr.bf16.mxu0 %v1592
    %2095 = vmatpush2.bf16.msra.mxu0 %v1591
    %2096 = vmatprep.mubr.bf16.mxu0 %v574
    %2097 = vmatmul.mubr.bf16.gmra.mxu0 %v573
    %v2098 = vpop.f32.mrf.mxu0
    %v2099 = vadd.f32 %v2058, %v2098
    %v2100 = vpop.f32.mrf.mxu0
    %v2101 = vadd.f32 %v2060, %v2100
    %v2102 = vpop.f32.mrf.mxu0
    %v2103 = vpop.f32.mrf.mxu0
    %2104 = vdwg.mxu0
    %2105 = vmatprep.subr.bf16.mxu0 %v1682
    %2106 = vmatpush1.bf16.msra.mxu0 %v1681
    %2107 = vmatprep.subr.bf16.mxu0 %v1676
    %2108 = vmatpush1.bf16.msra.mxu0 %v1675
    %2109 = vmatprep.subr.bf16.mxu0 %v1670
    %2110 = vmatpush1.bf16.msra.mxu0 %v1669
    %2111 = vmatprep.subr.bf16.mxu0 %v1664
    %2112 = vmatpush1.bf16.msra.mxu0 %v1663
    %2113 = vmatprep.subr.bf16.mxu0 %v1658
    %2114 = vmatpush1.bf16.msra.mxu0 %v1657
    %2115 = vmatprep.subr.bf16.mxu0 %v1652
    %2116 = vmatpush1.bf16.msra.mxu0 %v1651
    %2117 = vmatprep.subr.bf16.mxu0 %v1646
    %2118 = vmatpush1.bf16.msra.mxu0 %v1645
    %2119 = vmatprep.subr.bf16.mxu0 %v1640
    %2120 = vmatpush1.bf16.msra.mxu0 %v1639
    %2121 = vmatprep.subr.bf16.mxu0 %v1730
    %2122 = vmatpush2.bf16.msra.mxu0 %v1729
    %2123 = vmatprep.subr.bf16.mxu0 %v1724
    %2124 = vmatpush2.bf16.msra.mxu0 %v1723
    %2125 = vmatprep.subr.bf16.mxu0 %v1718
    %2126 = vmatpush2.bf16.msra.mxu0 %v1717
    %2127 = vmatprep.subr.bf16.mxu0 %v1712
    %2128 = vmatpush2.bf16.msra.mxu0 %v1711
    %2129 = vmatprep.subr.bf16.mxu0 %v1706
    %2130 = vmatpush2.bf16.msra.mxu0 %v1705
    %2131 = vmatprep.subr.bf16.mxu0 %v1700
    %2132 = vmatpush2.bf16.msra.mxu0 %v1699
    %2133 = vmatprep.subr.bf16.mxu0 %v1694
    %2134 = vmatpush2.bf16.msra.mxu0 %v1693
    %2135 = vmatprep.subr.bf16.mxu0 %v1688
    %2136 = vmatpush2.bf16.msra.mxu0 %v1687
    %2137 = vmatprep.mubr.bf16.mxu0 %v576
    %2138 = vmatmul.mubr.bf16.gmra.mxu0 %v575
    %v2139 = vpop.f32.mrf.mxu0
    %v2140 = vadd.f32 %v2099, %v2139
    %v2141 = vpop.f32.mrf.mxu0
    %v2142 = vadd.f32 %v2101, %v2141
    %v2143 = vpop.f32.mrf.mxu0
    %v2144 = vpop.f32.mrf.mxu0
    %2145 = vdwg.mxu0
    %2146 = vmatprep.subr.bf16.mxu0 %v1492
    %2147 = vmatpush1.bf16.msra.mxu0 %v1491
    %2148 = vmatprep.subr.bf16.mxu0 %v1486
    %2149 = vmatpush1.bf16.msra.mxu0 %v1485
    %2150 = vmatprep.subr.bf16.mxu0 %v1480
    %2151 = vmatpush1.bf16.msra.mxu0 %v1479
    %2152 = vmatprep.subr.bf16.mxu0 %v1474
    %2153 = vmatpush1.bf16.msra.mxu0 %v1473
    %2154 = vmatprep.subr.bf16.mxu0 %v1468
    %2155 = vmatpush1.bf16.msra.mxu0 %v1467
    %2156 = vmatprep.subr.bf16.mxu0 %v1462
    %2157 = vmatpush1.bf16.msra.mxu0 %v1461
    %2158 = vmatprep.subr.bf16.mxu0 %v1456
    %2159 = vmatpush1.bf16.msra.mxu0 %v1455
    %2160 = vmatprep.subr.bf16.mxu0 %v1450
    %2161 = vmatpush1.bf16.msra.mxu0 %v1449
    %2162 = vmatprep.subr.bf16.mxu0 %v1540
    %2163 = vmatpush2.bf16.msra.mxu0 %v1539
    %2164 = vmatprep.subr.bf16.mxu0 %v1534
    %2165 = vmatpush2.bf16.msra.mxu0 %v1533
    %2166 = vmatprep.subr.bf16.mxu0 %v1528
    %2167 = vmatpush2.bf16.msra.mxu0 %v1527
    %2168 = vmatprep.subr.bf16.mxu0 %v1522
    %2169 = vmatpush2.bf16.msra.mxu0 %v1521
    %2170 = vmatprep.subr.bf16.mxu0 %v1516
    %2171 = vmatpush2.bf16.msra.mxu0 %v1515
    %2172 = vmatprep.subr.bf16.mxu0 %v1510
    %2173 = vmatpush2.bf16.msra.mxu0 %v1509
    %2174 = vmatprep.subr.bf16.mxu0 %v1504
    %2175 = vmatpush2.bf16.msra.mxu0 %v1503
    %2176 = vmatprep.subr.bf16.mxu0 %v1498
    %2177 = vmatpush2.bf16.msra.mxu0 %v1497
    %2178 = vmatprep.mubr.bf16.mxu0 %v572
    %2179 = vmatmul.mubr.bf16.gmra.mxu0 %v571
    %v2180 = vpop.f32.mrf.mxu0
    %v2181 = vadd.f32 %v515, %v2180
    %v2182 = vpop.f32.mrf.mxu0
    %v2183 = vadd.f32 %v517, %v2182
    %v2184 = vpop.f32.mrf.mxu0
    %v2185 = vpop.f32.mrf.mxu0
    %2186 = vdwg.mxu0
    %2187 = vmatprep.subr.bf16.mxu0 %v1588
    %2188 = vmatpush1.bf16.msra.mxu0 %v1587
    %2189 = vmatprep.subr.bf16.mxu0 %v1582
    %2190 = vmatpush1.bf16.msra.mxu0 %v1581
    %2191 = vmatprep.subr.bf16.mxu0 %v1576
    %2192 = vmatpush1.bf16.msra.mxu0 %v1575
    %2193 = vmatprep.subr.bf16.mxu0 %v1570
    %2194 = vmatpush1.bf16.msra.mxu0 %v1569
    %2195 = vmatprep.subr.bf16.mxu0 %v1564
    %2196 = vmatpush1.bf16.msra.mxu0 %v1563
    %2197 = vmatprep.subr.bf16.mxu0 %v1558
    %2198 = vmatpush1.bf16.msra.mxu0 %v1557
    %2199 = vmatprep.subr.bf16.mxu0 %v1552
    %2200 = vmatpush1.bf16.msra.mxu0 %v1551
    %2201 = vmatprep.subr.bf16.mxu0 %v1546
    %2202 = vmatpush1.bf16.msra.mxu0 %v1545
    %2203 = vmatprep.subr.bf16.mxu0 %v1636
    %2204 = vmatpush2.bf16.msra.mxu0 %v1635
    %2205 = vmatprep.subr.bf16.mxu0 %v1630
    %2206 = vmatpush2.bf16.msra.mxu0 %v1629
    %2207 = vmatprep.subr.bf16.mxu0 %v1624
    %2208 = vmatpush2.bf16.msra.mxu0 %v1623
    %2209 = vmatprep.subr.bf16.mxu0 %v1618
    %2210 = vmatpush2.bf16.msra.mxu0 %v1617
    %2211 = vmatprep.subr.bf16.mxu0 %v1612
    %2212 = vmatpush2.bf16.msra.mxu0 %v1611
    %2213 = vmatprep.subr.bf16.mxu0 %v1606
    %2214 = vmatpush2.bf16.msra.mxu0 %v1605
    %2215 = vmatprep.subr.bf16.mxu0 %v1600
    %2216 = vmatpush2.bf16.msra.mxu0 %v1599
    %2217 = vmatprep.subr.bf16.mxu0 %v1594
    %2218 = vmatpush2.bf16.msra.mxu0 %v1593
    %2219 = vmatprep.mubr.bf16.mxu0 %v574
    %2220 = vmatmul.mubr.bf16.gmra.mxu0 %v573
    %v2221 = vpop.f32.mrf.mxu0
    %v2222 = vadd.f32 %v2181, %v2221
    %v2223 = vpop.f32.mrf.mxu0
    %v2224 = vadd.f32 %v2183, %v2223
    %v2225 = vpop.f32.mrf.mxu0
    %v2226 = vpop.f32.mrf.mxu0
    %2227 = vdwg.mxu0
    %2228 = vmatprep.subr.bf16.mxu0 %v1684
    %2229 = vmatpush1.bf16.msra.mxu0 %v1683
    %2230 = vmatprep.subr.bf16.mxu0 %v1678
    %2231 = vmatpush1.bf16.msra.mxu0 %v1677
    %2232 = vmatprep.subr.bf16.mxu0 %v1672
    %2233 = vmatpush1.bf16.msra.mxu0 %v1671
    %2234 = vmatprep.subr.bf16.mxu0 %v1666
    %2235 = vmatpush1.bf16.msra.mxu0 %v1665
    %2236 = vmatprep.subr.bf16.mxu0 %v1660
    %2237 = vmatpush1.bf16.msra.mxu0 %v1659
    %2238 = vmatprep.subr.bf16.mxu0 %v1654
    %2239 = vmatpush1.bf16.msra.mxu0 %v1653
    %2240 = vmatprep.subr.bf16.mxu0 %v1648
    %2241 = vmatpush1.bf16.msra.mxu0 %v1647
    %2242 = vmatprep.subr.bf16.mxu0 %v1642
    %2243 = vmatpush1.bf16.msra.mxu0 %v1641
    %2244 = vmatprep.subr.bf16.mxu0 %v1732
    %2245 = vmatpush2.bf16.msra.mxu0 %v1731
    %2246 = vmatprep.subr.bf16.mxu0 %v1726
    %2247 = vmatpush2.bf16.msra.mxu0 %v1725
    %2248 = vmatprep.subr.bf16.mxu0 %v1720
    %2249 = vmatpush2.bf16.msra.mxu0 %v1719
    %2250 = vmatprep.subr.bf16.mxu0 %v1714
    %2251 = vmatpush2.bf16.msra.mxu0 %v1713
    %2252 = vmatprep.subr.bf16.mxu0 %v1708
    %2253 = vmatpush2.bf16.msra.mxu0 %v1707
    %2254 = vmatprep.subr.bf16.mxu0 %v1702
    %2255 = vmatpush2.bf16.msra.mxu0 %v1701
    %2256 = vmatprep.subr.bf16.mxu0 %v1696
    %2257 = vmatpush2.bf16.msra.mxu0 %v1695
    %2258 = vmatprep.subr.bf16.mxu0 %v1690
    %2259 = vmatpush2.bf16.msra.mxu0 %v1689
    %2260 = vmatprep.mubr.bf16.mxu0 %v576
    %2261 = vmatmul.mubr.bf16.gmra.mxu0 %v575
    %v2262 = vpop.f32.mrf.mxu0
    %v2263 = vadd.f32 %v2222, %v2262
    %v2264 = vpop.f32.mrf.mxu0
    %v2265 = vadd.f32 %v2224, %v2264
    %v2266 = vpop.f32.mrf.mxu0
    %v2267 = vpop.f32.mrf.mxu0
    %2268 = vdwg.mxu0
    %2269 = vmatprep.subr.bf16.mxu0 %v1494
    %2270 = vmatpush1.bf16.msra.mxu0 %v1493
    %2271 = vmatprep.subr.bf16.mxu0 %v1488
    %2272 = vmatpush1.bf16.msra.mxu0 %v1487
    %2273 = vmatprep.subr.bf16.mxu0 %v1482
    %2274 = vmatpush1.bf16.msra.mxu0 %v1481
    %2275 = vmatprep.subr.bf16.mxu0 %v1476
    %2276 = vmatpush1.bf16.msra.mxu0 %v1475
    %2277 = vmatprep.subr.bf16.mxu0 %v1470
    %2278 = vmatpush1.bf16.msra.mxu0 %v1469
    %2279 = vmatprep.subr.bf16.mxu0 %v1464
    %2280 = vmatpush1.bf16.msra.mxu0 %v1463
    %2281 = vmatprep.subr.bf16.mxu0 %v1458
    %2282 = vmatpush1.bf16.msra.mxu0 %v1457
    %2283 = vmatprep.subr.bf16.mxu0 %v1452
    %2284 = vmatpush1.bf16.msra.mxu0 %v1451
    %2285 = vmatprep.subr.bf16.mxu0 %v1542
    %2286 = vmatpush2.bf16.msra.mxu0 %v1541
    %2287 = vmatprep.subr.bf16.mxu0 %v1536
    %2288 = vmatpush2.bf16.msra.mxu0 %v1535
    %2289 = vmatprep.subr.bf16.mxu0 %v1530
    %2290 = vmatpush2.bf16.msra.mxu0 %v1529
    %2291 = vmatprep.subr.bf16.mxu0 %v1524
    %2292 = vmatpush2.bf16.msra.mxu0 %v1523
    %2293 = vmatprep.subr.bf16.mxu0 %v1518
    %2294 = vmatpush2.bf16.msra.mxu0 %v1517
    %2295 = vmatprep.subr.bf16.mxu0 %v1512
    %2296 = vmatpush2.bf16.msra.mxu0 %v1511
    %2297 = vmatprep.subr.bf16.mxu0 %v1506
    %2298 = vmatpush2.bf16.msra.mxu0 %v1505
    %2299 = vmatprep.subr.bf16.mxu0 %v1500
    %2300 = vmatpush2.bf16.msra.mxu0 %v1499
    %2301 = vmatprep.mubr.bf16.mxu0 %v572
    %2302 = vmatmul.mubr.bf16.gmra.mxu0 %v571
    %v2303 = vpop.f32.mrf.mxu0
    %v2304 = vadd.f32 %v556, %v2303
    %v2305 = vpop.f32.mrf.mxu0
    %v2306 = vadd.f32 %v558, %v2305
    %v2307 = vpop.f32.mrf.mxu0
    %v2308 = vpop.f32.mrf.mxu0
    %2309 = vdwg.mxu0
    %2310 = vmatprep.subr.bf16.mxu0 %v1590
    %2311 = vmatpush1.bf16.msra.mxu0 %v1589
    %2312 = vmatprep.subr.bf16.mxu0 %v1584
    %2313 = vmatpush1.bf16.msra.mxu0 %v1583
    %2314 = vmatprep.subr.bf16.mxu0 %v1578
    %2315 = vmatpush1.bf16.msra.mxu0 %v1577
    %2316 = vmatprep.subr.bf16.mxu0 %v1572
    %2317 = vmatpush1.bf16.msra.mxu0 %v1571
    %2318 = vmatprep.subr.bf16.mxu0 %v1566
    %2319 = vmatpush1.bf16.msra.mxu0 %v1565
    %2320 = vmatprep.subr.bf16.mxu0 %v1560
    %2321 = vmatpush1.bf16.msra.mxu0 %v1559
    %2322 = vmatprep.subr.bf16.mxu0 %v1554
    %2323 = vmatpush1.bf16.msra.mxu0 %v1553
    %2324 = vmatprep.subr.bf16.mxu0 %v1548
    %2325 = vmatpush1.bf16.msra.mxu0 %v1547
    %2326 = vmatprep.subr.bf16.mxu0 %v1638
    %2327 = vmatpush2.bf16.msra.mxu0 %v1637
    %2328 = vmatprep.subr.bf16.mxu0 %v1632
    %2329 = vmatpush2.bf16.msra.mxu0 %v1631
    %2330 = vmatprep.subr.bf16.mxu0 %v1626
    %2331 = vmatpush2.bf16.msra.mxu0 %v1625
    %2332 = vmatprep.subr.bf16.mxu0 %v1620
    %2333 = vmatpush2.bf16.msra.mxu0 %v1619
    %2334 = vmatprep.subr.bf16.mxu0 %v1614
    %2335 = vmatpush2.bf16.msra.mxu0 %v1613
    %2336 = vmatprep.subr.bf16.mxu0 %v1608
    %2337 = vmatpush2.bf16.msra.mxu0 %v1607
    %2338 = vmatprep.subr.bf16.mxu0 %v1602
    %2339 = vmatpush2.bf16.msra.mxu0 %v1601
    %2340 = vmatprep.subr.bf16.mxu0 %v1596
    %2341 = vmatpush2.bf16.msra.mxu0 %v1595
    %2342 = vmatprep.mubr.bf16.mxu0 %v574
    %2343 = vmatmul.mubr.bf16.gmra.mxu0 %v573
    %v2344 = vpop.f32.mrf.mxu0
    %v2345 = vadd.f32 %v2304, %v2344
    %v2346 = vpop.f32.mrf.mxu0
    %v2347 = vadd.f32 %v2306, %v2346
    %v2348 = vpop.f32.mrf.mxu0
    %v2349 = vpop.f32.mrf.mxu0
    %2350 = vdwg.mxu0
    %2351 = vmatprep.subr.bf16.mxu0 %v1686
    %2352 = vmatpush1.bf16.msra.mxu0 %v1685
    %2353 = vmatprep.subr.bf16.mxu0 %v1680
    %2354 = vmatpush1.bf16.msra.mxu0 %v1679
    %2355 = vmatprep.subr.bf16.mxu0 %v1674
    %2356 = vmatpush1.bf16.msra.mxu0 %v1673
    %2357 = vmatprep.subr.bf16.mxu0 %v1668
    %2358 = vmatpush1.bf16.msra.mxu0 %v1667
    %2359 = vmatprep.subr.bf16.mxu0 %v1662
    %2360 = vmatpush1.bf16.msra.mxu0 %v1661
    %2361 = vmatprep.subr.bf16.mxu0 %v1656
    %2362 = vmatpush1.bf16.msra.mxu0 %v1655
    %2363 = vmatprep.subr.bf16.mxu0 %v1650
    %2364 = vmatpush1.bf16.msra.mxu0 %v1649
    %2365 = vmatprep.subr.bf16.mxu0 %v1644
    %2366 = vmatpush1.bf16.msra.mxu0 %v1643
    %2367 = vmatprep.subr.bf16.mxu0 %v1734
    %2368 = vmatpush2.bf16.msra.mxu0 %v1733
    %2369 = vmatprep.subr.bf16.mxu0 %v1728
    %2370 = vmatpush2.bf16.msra.mxu0 %v1727
    %2371 = vmatprep.subr.bf16.mxu0 %v1722
    %2372 = vmatpush2.bf16.msra.mxu0 %v1721
    %2373 = vmatprep.subr.bf16.mxu0 %v1716
    %2374 = vmatpush2.bf16.msra.mxu0 %v1715
    %2375 = vmatprep.subr.bf16.mxu0 %v1710
    %2376 = vmatpush2.bf16.msra.mxu0 %v1709
    %2377 = vmatprep.subr.bf16.mxu0 %v1704
    %2378 = vmatpush2.bf16.msra.mxu0 %v1703
    %2379 = vmatprep.subr.bf16.mxu0 %v1698
    %2380 = vmatpush2.bf16.msra.mxu0 %v1697
    %2381 = vmatprep.subr.bf16.mxu0 %v1692
    %2382 = vmatpush2.bf16.msra.mxu0 %v1691
    %2383 = vmatprep.mubr.bf16.mxu0 %v576
    %2384 = vmatmul.mubr.bf16.gmra.mxu0 %v575
    %v2385 = vpop.f32.mrf.mxu0
    %v2386 = vadd.f32 %v2345, %v2385
    %v2387 = vpop.f32.mrf.mxu0
    %v2388 = vadd.f32 %v2347, %v2387
    %v2389 = vpop.f32.mrf.mxu0
    %v2390 = vpop.f32.mrf.mxu0
    %2391 = vdwg.mxu0
    %v2392 = vld [vmem:[#allocation11] sm:$0x3f]
    %v2394 = vlaneseq
    %v2395 = vshrl.u32 %v2394, 7
    %v2396 = vsub.s32 0, %v2395
    %v2397 = vrot.slane %v2392, %v2396
    %v2398 = vlaneseq
    %v2399 = vshrl.u32 %v2398, 7
    %v2400 = vsub.s32 1, %v2399
    %v2401 = vrot.slane %v2392, %v2400
    %v2402 = vlaneseq
    %v2403 = vshrl.u32 %v2402, 7
    %v2404 = vsub.s32 2, %v2403
    %v2405 = vrot.slane %v2392, %v2404
    %v2406 = vlaneseq
    %v2407 = vshrl.u32 %v2406, 7
    %v2408 = vsub.s32 3, %v2407
    %v2409 = vrot.slane %v2392, %v2408
    %v2410 = vlaneseq
    %v2411 = vshrl.u32 %v2410, 7
    %v2412 = vsub.s32 4, %v2411
    %v2413 = vrot.slane %v2392, %v2412
    %v2414 = vlaneseq
    %v2415 = vshrl.u32 %v2414, 7
    %v2416 = vsub.s32 5, %v2415
    %v2417 = vrot.slane %v2392, %v2416
    %v2424 = vadd.f32 %v2140, %v2397
    %v2425 = vadd.f32 %v2142, %v2401
    %v2426 = vadd.f32 %v2263, %v2405
    %v2427 = vadd.f32 %v2265, %v2409
    %v2428 = vadd.f32 %v2386, %v2413
    %v2429 = vadd.f32 %v2388, %v2417
    %v2430 = vtanh.pop %v2424
    %v2431 = vtanh.pop %v2425
    %v2432 = vtanh.pop %v2426
    %v2433 = vtanh.pop %v2427
    %v2434 = vtanh.pop %v2428
    %v2435 = vtanh.pop %v2429
    %v2436 = vpack.c.bf16 %v2430, %v2430
    %v2437 = vpack.c.bf16 %v2431, %v2431
    %v2438 = vpack.c.bf16 %v2432, %v2432
    %v2439 = vpack.c.bf16 %v2433, %v2433
    %v2440 = vpack.c.bf16 %v2434, %v2434
    %v2441 = vpack.c.bf16 %v2435, %v2435
    %v2442 = vld [vmem:[#allocation12] sm:$0xf]
    %v2443 = vld [vmem:[#allocation12 + $0x4] sm:$0xf]
    %v2444 = vld [vmem:[#allocation12 + $0x8] sm:$0xf]
    %v2445 = vld [vmem:[#allocation12 + $0xc] sm:$0xf]
    %v2446 = vld [vmem:[#allocation12 + $0x10] sm:$0xf]
    %v2447 = vld [vmem:[#allocation12 + $0x14] sm:$0xf]
    %v2448 = vld [vmem:[#allocation12 + $0x18] sm:$0xf]
    %v2449 = vld [vmem:[#allocation12 + $0x1c] sm:$0xf]
    %v2450 = vld [vmem:[#allocation12 + $0x20] sm:$0xf]
    %v2451 = vld [vmem:[#allocation12 + $0x24] sm:$0xf]
    %v2452 = vld [vmem:[#allocation12 + $0x28] sm:$0xf]
    %v2453 = vld [vmem:[#allocation12 + $0x2c] sm:$0xf]
    %v2454 = vld [vmem:[#allocation12 + $0x30] sm:$0xf]
    %v2455 = vld [vmem:[#allocation12 + $0x34] sm:$0xf]
    %v2456 = vld [vmem:[#allocation12 + $0x38] sm:$0xf]
    %v2457 = vld [vmem:[#allocation12 + $0x3c] sm:$0xf]
    %v2458 = vld [vmem:[#allocation12 + $0x40] sm:$0xf]
    %v2459 = vld [vmem:[#allocation12 + $0x44] sm:$0xf]
    %v2460 = vld [vmem:[#allocation12 + $0x48] sm:$0xf]
    %v2461 = vld [vmem:[#allocation12 + $0x4c] sm:$0xf]
    %v2462 = vld [vmem:[#allocation12 + $0x50] sm:$0xf]
    %v2463 = vld [vmem:[#allocation12 + $0x54] sm:$0xf]
    %v2464 = vld [vmem:[#allocation12 + $0x58] sm:$0xf]
    %v2465 = vld [vmem:[#allocation12 + $0x5c] sm:$0xf]
    %v2466 = vld [vmem:[#allocation12 + $0x60] sm:$0xf]
    %v2467 = vld [vmem:[#allocation12 + $0x64] sm:$0xf]
    %v2468 = vld [vmem:[#allocation12 + $0x68] sm:$0xf]
    %v2469 = vld [vmem:[#allocation12 + $0x6c] sm:$0xf]
    %v2470 = vld [vmem:[#allocation12 + $0x70] sm:$0xf]
    %v2471 = vld [vmem:[#allocation12 + $0x74] sm:$0xf]
    %v2472 = vld [vmem:[#allocation12 + $0x78] sm:$0xf]
    %v2473 = vld [vmem:[#allocation12 + $0x7c] sm:$0xf]
    %v2474 = vld [vmem:[#allocation12 + $0x80] sm:$0xf]
    %v2475 = vld [vmem:[#allocation12 + $0x84] sm:$0xf]
    %v2476 = vld [vmem:[#allocation12 + $0x88] sm:$0xf]
    %v2477 = vld [vmem:[#allocation12 + $0x8c] sm:$0xf]
    %v2478 = vld [vmem:[#allocation12 + $0x90] sm:$0xf]
    %v2479 = vld [vmem:[#allocation12 + $0x94] sm:$0xf]
    %v2480 = vld [vmem:[#allocation12 + $0x98] sm:$0xf]
    %v2481 = vld [vmem:[#allocation12 + $0x9c] sm:$0xf]
    %v2482 = vld [vmem:[#allocation12 + $0xa0] sm:$0xf]
    %v2483 = vld [vmem:[#allocation12 + $0xa4] sm:$0xf]
    %v2484 = vld [vmem:[#allocation12 + $0xa8] sm:$0xf]
    %v2485 = vld [vmem:[#allocation12 + $0xac] sm:$0xf]
    %v2486 = vld [vmem:[#allocation12 + $0xb0] sm:$0xf]
    %v2487 = vld [vmem:[#allocation12 + $0xb4] sm:$0xf]
    %v2488 = vld [vmem:[#allocation12 + $0xb8] sm:$0xf]
    %v2489 = vld [vmem:[#allocation12 + $0xbc] sm:$0xf]
    %v2490 = vld [vmem:[#allocation12 + $0xc0] sm:$0xf]
    %v2491 = vld [vmem:[#allocation12 + $0xc4] sm:$0xf]
    %v2492 = vld [vmem:[#allocation12 + $0xc8] sm:$0xf]
    %v2493 = vld [vmem:[#allocation12 + $0xcc] sm:$0xf]
    %v2494 = vld [vmem:[#allocation12 + $0xd0] sm:$0xf]
    %v2495 = vld [vmem:[#allocation12 + $0xd4] sm:$0xf]
    %v2496 = vld [vmem:[#allocation12 + $0xd8] sm:$0xf]
    %v2497 = vld [vmem:[#allocation12 + $0xdc] sm:$0xf]
    %v2498 = vld [vmem:[#allocation12 + $0xe0] sm:$0xf]
    %v2499 = vld [vmem:[#allocation12 + $0xe4] sm:$0xf]
    %v2500 = vld [vmem:[#allocation12 + $0xe8] sm:$0xf]
    %v2501 = vld [vmem:[#allocation12 + $0xec] sm:$0xf]
    %v2502 = vld [vmem:[#allocation12 + $0xf0] sm:$0xf]
    %v2503 = vld [vmem:[#allocation12 + $0xf4] sm:$0xf]
    %v2504 = vld [vmem:[#allocation12 + $0xf8] sm:$0xf]
    %v2505 = vld [vmem:[#allocation12 + $0xfc] sm:$0xf]
    %v2506 = vld [vmem:[#allocation12 + $0x100] sm:$0xf]
    %v2507 = vld [vmem:[#allocation12 + $0x104] sm:$0xf]
    %v2508 = vld [vmem:[#allocation12 + $0x108] sm:$0xf]
    %v2509 = vld [vmem:[#allocation12 + $0x10c] sm:$0xf]
    %v2510 = vld [vmem:[#allocation12 + $0x110] sm:$0xf]
    %v2511 = vld [vmem:[#allocation12 + $0x114] sm:$0xf]
    %v2512 = vld [vmem:[#allocation12 + $0x118] sm:$0xf]
    %v2513 = vld [vmem:[#allocation12 + $0x11c] sm:$0xf]
    %v2514 = vld [vmem:[#allocation12 + $0x120] sm:$0xf]
    %v2515 = vld [vmem:[#allocation12 + $0x124] sm:$0xf]
    %v2516 = vld [vmem:[#allocation12 + $0x128] sm:$0xf]
    %v2517 = vld [vmem:[#allocation12 + $0x12c] sm:$0xf]
    %v2518 = vld [vmem:[#allocation12 + $0x130] sm:$0xf]
    %v2519 = vld [vmem:[#allocation12 + $0x134] sm:$0xf]
    %v2520 = vld [vmem:[#allocation12 + $0x138] sm:$0xf]
    %v2521 = vld [vmem:[#allocation12 + $0x13c] sm:$0xf]
    %v2522 = vld [vmem:[#allocation12 + $0x140] sm:$0xf]
    %v2523 = vld [vmem:[#allocation12 + $0x144] sm:$0xf]
    %v2524 = vld [vmem:[#allocation12 + $0x148] sm:$0xf]
    %v2525 = vld [vmem:[#allocation12 + $0x14c] sm:$0xf]
    %v2526 = vld [vmem:[#allocation12 + $0x150] sm:$0xf]
    %v2527 = vld [vmem:[#allocation12 + $0x154] sm:$0xf]
    %v2528 = vld [vmem:[#allocation12 + $0x158] sm:$0xf]
    %v2529 = vld [vmem:[#allocation12 + $0x15c] sm:$0xf]
    %v2530 = vld [vmem:[#allocation12 + $0x160] sm:$0xf]
    %v2531 = vld [vmem:[#allocation12 + $0x164] sm:$0xf]
    %v2532 = vld [vmem:[#allocation12 + $0x168] sm:$0xf]
    %v2533 = vld [vmem:[#allocation12 + $0x16c] sm:$0xf]
    %v2534 = vld [vmem:[#allocation12 + $0x170] sm:$0xf]
    %v2535 = vld [vmem:[#allocation12 + $0x174] sm:$0xf]
    %v2536 = vld [vmem:[#allocation12 + $0x178] sm:$0xf]
    %v2537 = vld [vmem:[#allocation12 + $0x17c] sm:$0xf]
    %v2538 = vld [vmem:[#allocation14] sm:$0x1]
    %v2540 = vlaneseq
    %v2541 = vshrl.u32 %v2540, 7
    %v2542 = vsub.s32 0, %v2541
    %v2543 = vrot.slane %v2538, %v2542
    %v2641 = vunpack.c.l.b16 %v2442
    %v2642 = vunpack.c.l.b16 %v2443
    %v2643 = vunpack.c.l.b16 %v2444
    %v2644 = vunpack.c.l.b16 %v2445
    %v2645 = vunpack.c.l.b16 %v2446
    %v2646 = vunpack.c.l.b16 %v2447
    %v2647 = vunpack.c.l.b16 %v2448
    %v2648 = vunpack.c.l.b16 %v2449
    %v2649 = vunpack.c.l.b16 %v2450
    %v2650 = vunpack.c.l.b16 %v2451
    %v2651 = vunpack.c.l.b16 %v2452
    %v2652 = vunpack.c.l.b16 %v2453
    %v2653 = vunpack.c.l.b16 %v2454
    %v2654 = vunpack.c.l.b16 %v2455
    %v2655 = vunpack.c.l.b16 %v2456
    %v2656 = vunpack.c.l.b16 %v2457
    %v2657 = vunpack.c.l.b16 %v2458
    %v2658 = vunpack.c.l.b16 %v2459
    %v2659 = vunpack.c.l.b16 %v2460
    %v2660 = vunpack.c.l.b16 %v2461
    %v2661 = vunpack.c.l.b16 %v2462
    %v2662 = vunpack.c.l.b16 %v2463
    %v2663 = vunpack.c.l.b16 %v2464
    %v2664 = vunpack.c.l.b16 %v2465
    %v2665 = vunpack.c.l.b16 %v2466
    %v2666 = vunpack.c.l.b16 %v2467
    %v2667 = vunpack.c.l.b16 %v2468
    %v2668 = vunpack.c.l.b16 %v2469
    %v2669 = vunpack.c.l.b16 %v2470
    %v2670 = vunpack.c.l.b16 %v2471
    %v2671 = vunpack.c.l.b16 %v2472
    %v2672 = vunpack.c.l.b16 %v2473
    %v2673 = vunpack.c.l.b16 %v2474
    %v2674 = vunpack.c.l.b16 %v2475
    %v2675 = vunpack.c.l.b16 %v2476
    %v2676 = vunpack.c.l.b16 %v2477
    %v2677 = vunpack.c.l.b16 %v2478
    %v2678 = vunpack.c.l.b16 %v2479
    %v2679 = vunpack.c.l.b16 %v2480
    %v2680 = vunpack.c.l.b16 %v2481
    %v2681 = vunpack.c.l.b16 %v2482
    %v2682 = vunpack.c.l.b16 %v2483
    %v2683 = vunpack.c.l.b16 %v2484
    %v2684 = vunpack.c.l.b16 %v2485
    %v2685 = vunpack.c.l.b16 %v2486
    %v2686 = vunpack.c.l.b16 %v2487
    %v2687 = vunpack.c.l.b16 %v2488
    %v2688 = vunpack.c.l.b16 %v2489
    %v2689 = vunpack.c.l.b16 %v2490
    %v2690 = vunpack.c.l.b16 %v2491
    %v2691 = vunpack.c.l.b16 %v2492
    %v2692 = vunpack.c.l.b16 %v2493
    %v2693 = vunpack.c.l.b16 %v2494
    %v2694 = vunpack.c.l.b16 %v2495
    %v2695 = vunpack.c.l.b16 %v2496
    %v2696 = vunpack.c.l.b16 %v2497
    %v2697 = vunpack.c.l.b16 %v2498
    %v2698 = vunpack.c.l.b16 %v2499
    %v2699 = vunpack.c.l.b16 %v2500
    %v2700 = vunpack.c.l.b16 %v2501
    %v2701 = vunpack.c.l.b16 %v2502
    %v2702 = vunpack.c.l.b16 %v2503
    %v2703 = vunpack.c.l.b16 %v2504
    %v2704 = vunpack.c.l.b16 %v2505
    %v2705 = vunpack.c.l.b16 %v2506
    %v2706 = vunpack.c.l.b16 %v2507
    %v2707 = vunpack.c.l.b16 %v2508
    %v2708 = vunpack.c.l.b16 %v2509
    %v2709 = vunpack.c.l.b16 %v2510
    %v2710 = vunpack.c.l.b16 %v2511
    %v2711 = vunpack.c.l.b16 %v2512
    %v2712 = vunpack.c.l.b16 %v2513
    %v2713 = vunpack.c.l.b16 %v2514
    %v2714 = vunpack.c.l.b16 %v2515
    %v2715 = vunpack.c.l.b16 %v2516
    %v2716 = vunpack.c.l.b16 %v2517
    %v2717 = vunpack.c.l.b16 %v2518
    %v2718 = vunpack.c.l.b16 %v2519
    %v2719 = vunpack.c.l.b16 %v2520
    %v2720 = vunpack.c.l.b16 %v2521
    %v2721 = vunpack.c.l.b16 %v2522
    %v2722 = vunpack.c.l.b16 %v2523
    %v2723 = vunpack.c.l.b16 %v2524
    %v2724 = vunpack.c.l.b16 %v2525
    %v2725 = vunpack.c.l.b16 %v2526
    %v2726 = vunpack.c.l.b16 %v2527
    %v2727 = vunpack.c.l.b16 %v2528
    %v2728 = vunpack.c.l.b16 %v2529
    %v2729 = vunpack.c.l.b16 %v2530
    %v2730 = vunpack.c.l.b16 %v2531
    %v2731 = vunpack.c.l.b16 %v2532
    %v2732 = vunpack.c.l.b16 %v2533
    %v2733 = vunpack.c.l.b16 %v2534
    %v2734 = vunpack.c.l.b16 %v2535
    %v2735 = vunpack.c.l.b16 %v2536
    %v2736 = vunpack.c.l.b16 %v2537
    %v2737 = vpack.c.b16 %v2642, %v2641
    %v2738 = vpack.c.b16 %v2644, %v2643
    %v2739 = vpack.c.b16 %v2646, %v2645
    %v2740 = vpack.c.b16 %v2648, %v2647
    %v2741 = vpack.c.b16 %v2650, %v2649
    %v2742 = vpack.c.b16 %v2652, %v2651
    %v2743 = vpack.c.b16 %v2654, %v2653
    %v2744 = vpack.c.b16 %v2656, %v2655
    %v2745 = vpack.c.b16 %v2658, %v2657
    %v2746 = vpack.c.b16 %v2660, %v2659
    %v2747 = vpack.c.b16 %v2662, %v2661
    %v2748 = vpack.c.b16 %v2664, %v2663
    %v2749 = vpack.c.b16 %v2666, %v2665
    %v2750 = vpack.c.b16 %v2668, %v2667
    %v2751 = vpack.c.b16 %v2670, %v2669
    %v2752 = vpack.c.b16 %v2672, %v2671
    %v2753 = vpack.c.b16 %v2674, %v2673
    %v2754 = vpack.c.b16 %v2676, %v2675
    %v2755 = vpack.c.b16 %v2678, %v2677
    %v2756 = vpack.c.b16 %v2680, %v2679
    %v2757 = vpack.c.b16 %v2682, %v2681
    %v2758 = vpack.c.b16 %v2684, %v2683
    %v2759 = vpack.c.b16 %v2686, %v2685
    %v2760 = vpack.c.b16 %v2688, %v2687
    %v2761 = vpack.c.b16 %v2690, %v2689
    %v2762 = vpack.c.b16 %v2692, %v2691
    %v2763 = vpack.c.b16 %v2694, %v2693
    %v2764 = vpack.c.b16 %v2696, %v2695
    %v2765 = vpack.c.b16 %v2698, %v2697
    %v2766 = vpack.c.b16 %v2700, %v2699
    %v2767 = vpack.c.b16 %v2702, %v2701
    %v2768 = vpack.c.b16 %v2704, %v2703
    %v2769 = vpack.c.b16 %v2706, %v2705
    %v2770 = vpack.c.b16 %v2708, %v2707
    %v2771 = vpack.c.b16 %v2710, %v2709
    %v2772 = vpack.c.b16 %v2712, %v2711
    %v2773 = vpack.c.b16 %v2714, %v2713
    %v2774 = vpack.c.b16 %v2716, %v2715
    %v2775 = vpack.c.b16 %v2718, %v2717
    %v2776 = vpack.c.b16 %v2720, %v2719
    %v2777 = vpack.c.b16 %v2722, %v2721
    %v2778 = vpack.c.b16 %v2724, %v2723
    %v2779 = vpack.c.b16 %v2726, %v2725
    %v2780 = vpack.c.b16 %v2728, %v2727
    %v2781 = vpack.c.b16 %v2730, %v2729
    %v2782 = vpack.c.b16 %v2732, %v2731
    %v2783 = vpack.c.b16 %v2734, %v2733
    %v2784 = vpack.c.b16 %v2736, %v2735
    %2833 = vmatprep.subr.bf16.mxu0 0
    %2834 = vmatpush1.bf16.msra.mxu0 %v2744
    %2835 = vmatprep.subr.bf16.mxu0 0
    %2836 = vmatpush1.bf16.msra.mxu0 %v2743
    %2837 = vmatprep.subr.bf16.mxu0 0
    %2838 = vmatpush1.bf16.msra.mxu0 %v2742
    %2839 = vmatprep.subr.bf16.mxu0 0
    %2840 = vmatpush1.bf16.msra.mxu0 %v2741
    %2841 = vmatprep.subr.bf16.mxu0 0
    %2842 = vmatpush1.bf16.msra.mxu0 %v2740
    %2843 = vmatprep.subr.bf16.mxu0 0
    %2844 = vmatpush1.bf16.msra.mxu0 %v2739
    %2845 = vmatprep.subr.bf16.mxu0 0
    %2846 = vmatpush1.bf16.msra.mxu0 %v2738
    %2847 = vmatprep.subr.bf16.mxu0 0
    %2848 = vmatpush1.bf16.msra.mxu0 %v2737
    %2849 = vmatprep.subr.bf16.mxu0 0
    %2850 = vmatpush2.bf16.msra.mxu0 %v2752
    %2851 = vmatprep.subr.bf16.mxu0 0
    %2852 = vmatpush2.bf16.msra.mxu0 %v2751
    %2853 = vmatprep.subr.bf16.mxu0 0
    %2854 = vmatpush2.bf16.msra.mxu0 %v2750
    %2855 = vmatprep.subr.bf16.mxu0 0
    %2856 = vmatpush2.bf16.msra.mxu0 %v2749
    %2857 = vmatprep.subr.bf16.mxu0 0
    %2858 = vmatpush2.bf16.msra.mxu0 %v2748
    %2859 = vmatprep.subr.bf16.mxu0 0
    %2860 = vmatpush2.bf16.msra.mxu0 %v2747
    %2861 = vmatprep.subr.bf16.mxu0 0
    %2862 = vmatpush2.bf16.msra.mxu0 %v2746
    %2863 = vmatprep.subr.bf16.mxu0 0
    %2864 = vmatpush2.bf16.msra.mxu0 %v2745
    %2865 = vmatprep.mubr.bf16.mxu0 %v2437
    %2866 = vmatmul.mubr.bf16.gmra.mxu0 %v2436
    %v2867 = vpop.f32.mrf.mxu0
    %v2868 = vadd.f32 %v2543, %v2867
    %v2869 = vpop.f32.mrf.mxu0
    %v2870 = vpop.f32.mrf.mxu0
    %v2871 = vpop.f32.mrf.mxu0
    %2872 = vdwg.mxu0
    %2873 = vmatprep.subr.bf16.mxu0 0
    %2874 = vmatpush1.bf16.msra.mxu0 %v2760
    %2875 = vmatprep.subr.bf16.mxu0 0
    %2876 = vmatpush1.bf16.msra.mxu0 %v2759
    %2877 = vmatprep.subr.bf16.mxu0 0
    %2878 = vmatpush1.bf16.msra.mxu0 %v2758
    %2879 = vmatprep.subr.bf16.mxu0 0
    %2880 = vmatpush1.bf16.msra.mxu0 %v2757
    %2881 = vmatprep.subr.bf16.mxu0 0
    %2882 = vmatpush1.bf16.msra.mxu0 %v2756
    %2883 = vmatprep.subr.bf16.mxu0 0
    %2884 = vmatpush1.bf16.msra.mxu0 %v2755
    %2885 = vmatprep.subr.bf16.mxu0 0
    %2886 = vmatpush1.bf16.msra.mxu0 %v2754
    %2887 = vmatprep.subr.bf16.mxu0 0
    %2888 = vmatpush1.bf16.msra.mxu0 %v2753
    %2889 = vmatprep.subr.bf16.mxu0 0
    %2890 = vmatpush2.bf16.msra.mxu0 %v2768
    %2891 = vmatprep.subr.bf16.mxu0 0
    %2892 = vmatpush2.bf16.msra.mxu0 %v2767
    %2893 = vmatprep.subr.bf16.mxu0 0
    %2894 = vmatpush2.bf16.msra.mxu0 %v2766
    %2895 = vmatprep.subr.bf16.mxu0 0
    %2896 = vmatpush2.bf16.msra.mxu0 %v2765
    %2897 = vmatprep.subr.bf16.mxu0 0
    %2898 = vmatpush2.bf16.msra.mxu0 %v2764
    %2899 = vmatprep.subr.bf16.mxu0 0
    %2900 = vmatpush2.bf16.msra.mxu0 %v2763
    %2901 = vmatprep.subr.bf16.mxu0 0
    %2902 = vmatpush2.bf16.msra.mxu0 %v2762
    %2903 = vmatprep.subr.bf16.mxu0 0
    %2904 = vmatpush2.bf16.msra.mxu0 %v2761
    %2905 = vmatprep.mubr.bf16.mxu0 %v2439
    %2906 = vmatmul.mubr.bf16.gmra.mxu0 %v2438
    %v2907 = vpop.f32.mrf.mxu0
    %v2908 = vadd.f32 %v2868, %v2907
    %v2909 = vpop.f32.mrf.mxu0
    %v2910 = vpop.f32.mrf.mxu0
    %v2911 = vpop.f32.mrf.mxu0
    %2912 = vdwg.mxu0
    %2913 = vmatprep.subr.bf16.mxu0 0
    %2914 = vmatpush1.bf16.msra.mxu0 %v2776
    %2915 = vmatprep.subr.bf16.mxu0 0
    %2916 = vmatpush1.bf16.msra.mxu0 %v2775
    %2917 = vmatprep.subr.bf16.mxu0 0
    %2918 = vmatpush1.bf16.msra.mxu0 %v2774
    %2919 = vmatprep.subr.bf16.mxu0 0
    %2920 = vmatpush1.bf16.msra.mxu0 %v2773
    %2921 = vmatprep.subr.bf16.mxu0 0
    %2922 = vmatpush1.bf16.msra.mxu0 %v2772
    %2923 = vmatprep.subr.bf16.mxu0 0
    %2924 = vmatpush1.bf16.msra.mxu0 %v2771
    %2925 = vmatprep.subr.bf16.mxu0 0
    %2926 = vmatpush1.bf16.msra.mxu0 %v2770
    %2927 = vmatprep.subr.bf16.mxu0 0
    %2928 = vmatpush1.bf16.msra.mxu0 %v2769
    %2929 = vmatprep.subr.bf16.mxu0 0
    %2930 = vmatpush2.bf16.msra.mxu0 %v2784
    %2931 = vmatprep.subr.bf16.mxu0 0
    %2932 = vmatpush2.bf16.msra.mxu0 %v2783
    %2933 = vmatprep.subr.bf16.mxu0 0
    %2934 = vmatpush2.bf16.msra.mxu0 %v2782
    %2935 = vmatprep.subr.bf16.mxu0 0
    %2936 = vmatpush2.bf16.msra.mxu0 %v2781
    %2937 = vmatprep.subr.bf16.mxu0 0
    %2938 = vmatpush2.bf16.msra.mxu0 %v2780
    %2939 = vmatprep.subr.bf16.mxu0 0
    %2940 = vmatpush2.bf16.msra.mxu0 %v2779
    %2941 = vmatprep.subr.bf16.mxu0 0
    %2942 = vmatpush2.bf16.msra.mxu0 %v2778
    %2943 = vmatprep.subr.bf16.mxu0 0
    %2944 = vmatpush2.bf16.msra.mxu0 %v2777
    %2945 = vmatprep.mubr.bf16.mxu0 %v2441
    %2946 = vmatmul.mubr.bf16.gmra.mxu0 %v2440
    %v2947 = vpop.f32.mrf.mxu0
    %v2948 = vadd.f32 %v2908, %v2947
    %v2949 = vpop.f32.mrf.mxu0
    %v2950 = vpop.f32.mrf.mxu0
    %v2951 = vpop.f32.mrf.mxu0
    %2952 = vdwg.mxu0
    %2953 = vst [vmem:[#allocation15] sm:$0xff] %v2948
    %v2954 = vld [vmem:[%s7] sm:$0xff]
    %v2955 = vlaneseq
    %v2956 = vand.u32 %v2955, 127
    %vm2957 = vcmp.lt.s32.totalorder %v2956, 5
    %v2958 = vsel %vm2957, %v2948, -inf
    %2959 = vmax.xlane.f32.xlu0 %v2958
    %v2960 = vpop.xlane.xlu0 %2959
    %v2961 = vsub.f32 %v2958, %v2960
    %v2962 = vmul.f32 %v2961, 1.442695
    %v2963 = vpow.pop %v2962
    %2964 = vadd.xlane.f32.xlu0 %v2963
    %v2965 = vpop.xlane.xlu0 %2964
    %v2966 = vlog2.pop %v2965
    %v2967 = vmul.f32 %v2966, 0.6931472
    %v2968 = vadd.f32 %v2960, %v2967
    %2969 = vset.pattern.permute.xlu0 0
    %2970 = vperm.xlu0 %2969, %v2954
    %v2971 = vpop.permute.xlu0 %2970
    %vm2972 = vcmp.eq.s32.totalorder %v2956, %v2971
    %v2973 = vsel %vm2972, %v2948, 0.0
    %2974 = vadd.xlane.f32.xlu0 %v2973
    %v2975 = vpop.xlane.xlu0 %2974
    %v2976 = vsub.f32 %v2968, %v2975
    %vm2977 = vcmp.lt.s32.totalorder %v2956, 4
    %v2978 = vsel %vm2977, %v2948, -inf
    %2979 = vmax.xlane.f32.xlu0 %v2978
    %v2980 = vpop.xlane.xlu0 %2979
    %v2981 = vsub.f32 %v2968, %v2980
    %vm2982 = vcmp.ge.s32.totalorder %v2954, 0
    %v2983 = vsel %vm2982, 1, 0
    %v2984 = vcvt.s32.f32 %v2983
    %vm2985 = vcmp.ne.s32.totalorder %v2954, 5
    %v2986 = vsel %vm2985, 1, 0
    %v2987 = vcvt.s32.f32 %v2986
    %v2988 = vmul.f32 %v2984, %v2987
    %vm2989 = vcmp.eq.s32.totalorder %v2954, 5
    %v2990 = vsel %vm2989, 1, 0
    %v2991 = vcvt.s32.f32 %v2990
    %v2992 = vmul.f32 %v2984, %v2991
    %v2993 = vld [vmem:[#allocation2] sm:$0x1]
    %v2994 = vmul.f32 %v2988, %v2976
    %vm2995 = vcmask 7168
    %v2996 = vsel %vm2995, %v2994, 0.0
    %v2997 = vrot.slane %v2996, 4
    %v2998 = vadd.f32 %v2996, %v2997
    %v2999 = vrot.slane %v2998, 2
    %v3000 = vadd.f32 %v2998, %v2999
    %v3001 = vrot.slane %v3000, 1
    %v3002 = vadd.f32 %v3000, %v3001
    %v3003 = vadd.f32 %v2993, %v3002
    %vm3004 = vcmask 0
    %3005 = vst.msk [vmem:[#allocation2] sm:$0x1] %vm3004, %v3003
    %v3006 = vld [vmem:[#allocation3] sm:$0x1]
    %v3007 = vsel %vm2995, %v2988, 0.0
    %v3008 = vrot.slane %v3007, 4
    %v3009 = vadd.f32 %v3007, %v3008
    %v3010 = vrot.slane %v3009, 2
    %v3011 = vadd.f32 %v3009, %v3010
    %v3012 = vrot.slane %v3011, 1
    %v3013 = vadd.f32 %v3011, %v3012
    %v3014 = vadd.f32 %v3006, %v3013
    %3015 = vst.msk [vmem:[#allocation3] sm:$0x1] %vm3004, %v3014
    %v3016 = vld [vmem:[#allocation4] sm:$0x1]
    %v3017 = vmul.f32 %v2992, %v2981
    %v3018 = vsel %vm2995, %v3017, 0.0
    %v3019 = vrot.slane %v3018, 4
    %v3020 = vadd.f32 %v3018, %v3019
    %v3021 = vrot.slane %v3020, 2
    %v3022 = vadd.f32 %v3020, %v3021
    %v3023 = vrot.slane %v3022, 1
    %v3024 = vadd.f32 %v3022, %v3023
    %v3025 = vadd.f32 %v3016, %v3024
    %3026 = vst.msk [vmem:[#allocation4] sm:$0x1] %vm3004, %v3025
    %v3027 = vld [vmem:[#allocation5] sm:$0x1]
    %v3028 = vsel %vm2995, %v2992, 0.0
    %v3029 = vrot.slane %v3028, 4
    %v3030 = vadd.f32 %v3028, %v3029
    %v3031 = vrot.slane %v3030, 2
    %v3032 = vadd.f32 %v3030, %v3031
    %v3033 = vrot.slane %v3032, 1
    %v3034 = vadd.f32 %v3032, %v3033
    %v3035 = vadd.f32 %v3027, %v3034
    %3036 = vst.msk [vmem:[#allocation5] sm:$0x1] %vm3004, %v3035
    // Predicated region
    $region58: #{multitask_forward.1} parent=1 // pred_check
      %p3037 = pneg %p98
    $region59: #{multitask_forward.1} parent=1 // pred_check_branch
      %3039 = sbr.rel (%p3037) target = $region61
    $region60: #{multitask_forward.1} parent=1 // pred_region
      %v3040 = vld [vmem:[#allocation3] sm:$0x1]
      %v3041 = vmax.f32 %v3040, 1.0
      %v3042 = vld [vmem:[#allocation5] sm:$0x1]
      %v3043 = vmax.f32 %v3042, 1.0
      %v3044 = vld [vmem:[#allocation2] sm:$0x1]
      %v3045 = vrcp.pop %v3041
      %v3046 = vmul.f32 %v3044, %v3045
      %v3047 = vld [vmem:[#allocation4] sm:$0x1]
      %v3048 = vrcp.pop %v3043
      %v3049 = vmul.f32 %v3047, %v3048
      %v3050 = vmul.f32 %v3049, 0.5
      %v3051 = vadd.f32 %v3046, %v3050
      %3052 = vst.msk [vmem:[#allocation16] sm:$0x1] %vm3004, %v3051
    $region61: #{multitask_forward.1} parent=1 // pred_fallthru
      _
    // Predicated region
    $region62: #{multitask_forward.1} parent=1 // pred_check
      _
    $region63: #{multitask_forward.1} parent=1 // pred_check_branch
      %3054 = sbr.rel (0) target = $region65
    $region64: #{multitask_forward.1} parent=1 // pred_region
      %s3056 = ssub.s32 128, 128
      %3057 = vsyncadd [#allocation8], %s3056
      %s3059 = sshll.u32 [#allocation15], 4
      %s3060 = int_to_ptr.vmem [resolvable:$true] %s3059
      %3062 = dma.vmem_to_hbm [thread:$0]  %s3060, 128, %s8, [#allocation8]
    $region65: #{multitask_forward.1} parent=1 // pred_fallthru
      _
    // Predicated region
    $region66: #{multitask_forward.1} parent=1 // pred_check
      _
    $region67: #{multitask_forward.1} parent=1 // pred_check_branch
      %3064 = sbr.rel (0) target = $region69
    $region68: #{multitask_forward.1} parent=1 // pred_region
      %s3066 = ssub.s32 16, 16
      %3067 = vsyncadd [#allocation17], %s3066
      %s3069 = sshll.u32 [#allocation16], 4
      %s3070 = int_to_ptr.vmem [resolvable:$true] %s3069
      %3072 = dma.vmem_to_hbm [thread:$0]  %s3070, 16, %s9, [#allocation17]
    $region69: #{multitask_forward.1} parent=1 // pred_fallthru
      _
    // Predicated region
    $region70: #{multitask_forward.1} parent=1 // pred_check
      _
    $region71: #{multitask_forward.1} parent=1 // pred_check_branch
      %3074 = sbr.rel (0) target = $region73
    $region72: #{multitask_forward.1} parent=1 // pred_region
      %3075 = dma.done [#allocation8], 128
    $region73: #{multitask_forward.1} parent=1 // pred_fallthru
      _
    // Predicated region
    $region74: #{multitask_forward.1} parent=1 // pred_check
      _
    $region75: #{multitask_forward.1} parent=1 // pred_check_branch
      %3077 = sbr.rel (0) target = $region77
    $region76: #{multitask_forward.1} parent=1 // pred_region
      %3078 = dma.done [#allocation17], 16
    $region77: #{multitask_forward.1} parent=1 // pred_fallthru
      _
    %3079 = vsyncpa [#allocation7], 1
    %3080 = vsyncpa [#allocation10], 1
    %3081 = vsyncpa [#allocation13], 1
    %3082 = vsyncpa [#allocation8], 1
    %3083 = vsyncpa [#allocation17], 1

</llo_original>
